<compile_context>
chip_gen: v6e
topology: v6e:2x2x1
jax: 0.10.0
libtpu: 0.0.40
codegen_flags: <defaults>
</compile_context>

<pallas_src>
import inspect

import jax
import jax.numpy as jnp
from jax.experimental import pallas as pl
from jax.experimental.pallas import tpu as pltpu


# ---------------------------------------------------------------------------
# helpers
# ---------------------------------------------------------------------------
def _round_up(x, m):
    return ((x + m - 1) // m) * m


def _pad2d(a, rows, cols):
    pr, pc = rows - a.shape[0], cols - a.shape[1]
    if pr == 0 and pc == 0:
        return a
    return jnp.pad(a, ((0, pr), (0, pc)))


def _supports_single_buffer():
    """Trace-time feature detection for pl.BlockSpec(..., pipeline_mode=pl.Buffered(1))."""
    if not hasattr(pl, "Buffered"):
        return False
    try:
        return "pipeline_mode" in inspect.signature(pl.BlockSpec).parameters
    except (TypeError, ValueError):
        return False


_HAS_SINGLE_BUFFER = _supports_single_buffer()


def _resident_spec(shape):
    """Constant-index BlockSpec for an operand resident across the whole grid."""
    idx = lambda i: (0,) * len(shape)
    if _HAS_SINGLE_BUFFER:
        return pl.BlockSpec(shape, idx, pipeline_mode=pl.Buffered(1))
    return pl.BlockSpec(shape, idx)


def _tpu_vmem_and_cores():
    """(per-core VMEM bytes, TensorCores per chip).  Conservative fallbacks."""
    vmem_cap = 64 * 1024 * 1024  # conservative default (v7x per-TC)
    try:
        info = pltpu.get_tpu_info()
        vmem_cap = int(getattr(info, "vmem_capacity_bytes", vmem_cap))
    except Exception:
        pass
    kind = ""
    try:
        kind = jax.devices()[0].device_kind.lower()
    except Exception:
        pass
    # v7x: 2 TensorCores per chip, 64 MiB VMEM each.  v5e/v6e: 1 TC, 128 MiB.
    n_cores = 2 if ("v7" in kind or vmem_cap <= 80 * 1024 * 1024) else 1
    return vmem_cap, n_cores


# ---------------------------------------------------------------------------
# kernel
# ---------------------------------------------------------------------------
def _mlp_ae_kernel(x_ref, w1_ref, b1_ref, w2_ref, b2_ref,
                   w3_ref, b3_ref, w4_ref, b4_ref, o_ref):
    # Feed the MXU in the weights' dtype (bf16 by default); accumulate in f32
    # and keep bias add + ReLU in f32 (v5e has no bf16 VPU).
    x = x_ref[...].astype(w1_ref.dtype)

    h = jnp.dot(x, w1_ref[...], preferred_element_type=jnp.float32) + b1_ref[...]
    h = jnp.maximum(h, 0.0)

    z = jnp.dot(h.astype(w2_ref.dtype), w2_ref[...],
                preferred_element_type=jnp.float32) + b2_ref[...]

    h2 = jnp.dot(z.astype(w3_ref.dtype), w3_ref[...],
                 preferred_element_type=jnp.float32) + b3_ref[...]
    h2 = jnp.maximum(h2, 0.0)

    y = jnp.dot(h2.astype(w4_ref.dtype), w4_ref[...],
                preferred_element_type=jnp.float32) + b4_ref[...]
    y = jnp.maximum(y, 0.0)

    o_ref[...] = y.astype(o_ref.dtype)


# ---------------------------------------------------------------------------
# wrapper
# ---------------------------------------------------------------------------
def dense_mlp_autoencoder_forward(x, params, *, batch_tile=None,
                                  compute_dtype=jnp.bfloat16, out_dtype=None):
    """x: (B, input_size) f32. params: w1..w4 as (in, out), b1..b4 as (1, out), f32."""
    B, input_size = x.shape
    hidden_size = params["w1"].shape[1]
    bottleneck_size = params["w2"].shape[1]
    out_dtype = x.dtype if out_dtype is None else jnp.dtype(out_dtype)

    # Activations keep the true input width (full-array-dim blocks are legal);
    # only the internal hidden/bottleneck widths are zero-padded to 128 lanes
    # (exact math: padded weight columns/biases are zero, ReLU(0)=0).
    I = input_size
    Hp = _round_up(hidden_size, 128)
    Np = _round_up(bottleneck_size, 128)

    # ---- pad + cast operands (weights -> compute dtype, biases stay f32) ----
    w1 = _pad2d(params["w1"], I, Hp).astype(compute_dtype)
    b1 = _pad2d(params["b1"], 1, Hp).astype(jnp.float32)
    w2 = _pad2d(params["w2"], Hp, Np).astype(compute_dtype)
    b2 = _pad2d(params["b2"], 1, Np).astype(jnp.float32)
    w3 = _pad2d(params["w3"], Np, Hp).astype(compute_dtype)
    b3 = _pad2d(params["b3"], 1, Hp).astype(jnp.float32)
    w4 = _pad2d(params["w4"], Hp, I).astype(compute_dtype)
    b4 = _pad2d(params["b4"], 1, I).astype(jnp.float32)
    weights = (w1, b1, w2, b2, w3, b3, w4, b4)

    # ---- adaptive batch tile from per-core VMEM ----
    vmem_cap, n_cores = _tpu_vmem_and_cores()
    budget = int(0.8 * vmem_cap)

    wbytes = sum(int(a.size) * a.dtype.itemsize for a in weights)
    w_resident = wbytes * (1 if _HAS_SINGLE_BUFFER else 2)
    # TODO(synk): when resident weights exceed ~40-50% of per-core VMEM (large
    # hidden widths, esp. v7x 64 MiB/TC), stream w1/w4 hidden-dim tiles via
    # pltpu.emit_pipeline (or fp8-quantize on v7x) instead of keeping them
    # fully resident; the current path assumes they fit.

    x_itemsize = jnp.dtype(x.dtype).itemsize
    o_itemsize = jnp.dtype(out_dtype).itemsize
    per_row = (2 * I * x_itemsize                        # x tile, double-buffered
               + 2 * I * o_itemsize                      # out tile, double-buffered
               + int(1.25 * 4 * (Hp + Np + Hp + I)))     # live f32 intermediates (+margin)

    avail = max(budget - w_resident, 8 * per_row)
    tb_cap = max(8, avail // per_row)

    if batch_tile is not None:
        tb = max(8, _round_up(int(batch_tile), 8))
    else:
        tb = min(tb_cap, 4096, _round_up(B, 8))
        if n_cores >= 2 and B > 8:
            # Keep >=2 grid steps so the "parallel" batch axis shards across
            # both v7x TensorCores (a 1-step grid idles the second TC).
            tb = min(tb, _round_up(pl.cdiv(B, 2), 8))
        if tb >= 256:
            tb = (tb // 128) * 128
        tb = max(8, (tb // 8) * 8)

    steps = pl.cdiv(B, tb)
    Bp = steps * tb
    xp = x if Bp == B else jnp.pad(x, ((0, Bp - B), (0, 0)))

    # ---- VMEM limit: actual footprint (no fudge), clamped to chip capacity ----
    io_bytes = 2 * tb * I * x_itemsize + 2 * tb * I * o_itemsize
    act_bytes = int(1.25 * 4 * tb * (Hp + Np + Hp + I))
    est = w_resident + io_bytes + act_bytes + (2 << 20)
    vmem_limit = int(min(max(est, 16 << 20), vmem_cap))

    flops = 2 * Bp * (I * Hp + Hp * Np + Np * Hp + Hp * I)
    bytes_accessed = int(xp.size * x_itemsize + Bp * I * o_itemsize + wbytes)
    cost = pl.CostEstimate(flops=flops, transcendentals=0,
                           bytes_accessed=bytes_accessed)

    in_specs = [pl.BlockSpec((tb, I), lambda i: (i, 0))]
    in_specs += [_resident_spec(a.shape) for a in weights]

    out_p = pl.pallas_call(
        _mlp_ae_kernel,
        out_shape=jax.ShapeDtypeStruct((Bp, I), out_dtype),
        grid_spec=pltpu.PrefetchScalarGridSpec(
            num_scalar_prefetch=0,
            grid=(steps,),
            in_specs=in_specs,
            out_specs=pl.BlockSpec((tb, I), lambda i: (i, 0)),
        ),
        compiler_params=pltpu.CompilerParams(
            dimension_semantics=("parallel",),
            vmem_limit_bytes=vmem_limit),
        cost_estimate=cost,
    )(xp, *weights)

    return out_p if Bp == B else out_p[:B]


# ---------------------------------------------------------------------------
# params / reference
# ---------------------------------------------------------------------------
def init_params(key, input_size, hidden_size, bottleneck_size, dtype=jnp.float32):
    """PyTorch-style init: U(-1/sqrt(fan_in), 1/sqrt(fan_in)); weights as (in, out)."""
    def linear(k, fan_in, fan_out):
        kw, kb = jax.random.split(k)
        bound = 1.0 / jnp.sqrt(jnp.float32(fan_in))
        w = jax.random.uniform(kw, (fan_in, fan_out), dtype, -bound, bound)
        b = jax.random.uniform(kb, (1, fan_out), dtype, -bound, bound)
        return w, b

    k1, k2, k3, k4 = jax.random.split(key, 4)
    w1, b1 = linear(k1, input_size, hidden_size)
    w2, b2 = linear(k2, hidden_size, bottleneck_size)
    w3, b3 = linear(k3, bottleneck_size, hidden_size)
    w4, b4 = linear(k4, hidden_size, input_size)
    return dict(w1=w1, b1=b1, w2=w2, b2=b2, w3=w3, b3=b3, w4=w4, b4=b4)


def _reference_forward(x, p):
    h = jnp.maximum(x @ p["w1"] + p["b1"], 0.0)
    z = h @ p["w2"] + p["b2"]
    h2 = jnp.maximum(z @ p["w3"] + p["b3"], 0.0)
    return jnp.maximum(h2 @ p["w4"] + p["b4"], 0.0)


if __name__ == "__main__":
    key = jax.random.PRNGKey(0)
    k_params, k_x = jax.random.split(key)

    # Small but representative (enough rows that v7x gets a 2-step parallel grid).
    batch, input_size, hidden_size, bottleneck_size = 512, 32, 64, 16
    params = init_params(k_params, input_size, hidden_size, bottleneck_size)
    x = jax.random.normal(k_x, (batch, input_size), jnp.float32)

    ref = _reference_forward(x, params)

    # Exact f32 MXU path.
    out_f32 = jax.block_until_ready(
        dense_mlp_autoencoder_forward(x, params, compute_dtype=jnp.float32))
    assert out_f32.shape == (batch, input_size)
    assert jnp.allclose(out_f32, ref, atol=1e-4, rtol=1e-4)

    # Default bf16-on-MXU path (f32 accumulation / bias / ReLU).
    out_bf16 = jax.block_until_ready(dense_mlp_autoencoder_forward(x, params))
    assert out_bf16.shape == (batch, input_size)
    assert jnp.allclose(out_bf16, ref, atol=5e-2, rtol=5e-2)

    # Explicit small-tile path to exercise the multi-step pipelined grid.
    out_tiled = jax.block_until_ready(
        dense_mlp_autoencoder_forward(x, params, batch_tile=128,
                                      compute_dtype=jnp.float32))
    assert jnp.allclose(out_tiled, ref, atol=1e-4, rtol=1e-4)

    print("KERNEL_OK")
</pallas_src>

<mosaic_0001>
module attributes {stable_mosaic.version = 11 : i64} {
  func.func @_mlp_ae_kernel(%arg0: i32, %arg1: memref<256x32xf32, #tpu.memory_space<vmem>>, %arg2: memref<32x128xf32, #tpu.memory_space<vmem>>, %arg3: memref<1x128xf32, #tpu.memory_space<vmem>>, %arg4: memref<128x128xf32, #tpu.memory_space<vmem>>, %arg5: memref<1x128xf32, #tpu.memory_space<vmem>>, %arg6: memref<128x128xf32, #tpu.memory_space<vmem>>, %arg7: memref<1x128xf32, #tpu.memory_space<vmem>>, %arg8: memref<128x32xf32, #tpu.memory_space<vmem>>, %arg9: memref<1x32xf32, #tpu.memory_space<vmem>>, %arg10: memref<256x32xf32, #tpu.memory_space<vmem>>) attributes {dimension_semantics = [#tpu.dimension_semantics<parallel>], iteration_bounds = array<i64: 2>, scalar_prefetch = 0 : i64, scratch_operands = 0 : i64, tpu.core_type = #tpu.core_type<tc>, window_params = [{transform_indices = @transform_0, window_bounds = array<i64: 256, 32>}, {pipeline_mode = #tpu.pipeline_mode<synchronous>, transform_indices = @transform_1, window_bounds = array<i64: 32, 128>}, {pipeline_mode = #tpu.pipeline_mode<synchronous>, transform_indices = @transform_2, window_bounds = array<i64: 1, 128>}, {pipeline_mode = #tpu.pipeline_mode<synchronous>, transform_indices = @transform_3, window_bounds = array<i64: 128, 128>}, {pipeline_mode = #tpu.pipeline_mode<synchronous>, transform_indices = @transform_4, window_bounds = array<i64: 1, 128>}, {pipeline_mode = #tpu.pipeline_mode<synchronous>, transform_indices = @transform_5, window_bounds = array<i64: 128, 128>}, {pipeline_mode = #tpu.pipeline_mode<synchronous>, transform_indices = @transform_6, window_bounds = array<i64: 1, 128>}, {pipeline_mode = #tpu.pipeline_mode<synchronous>, transform_indices = @transform_7, window_bounds = array<i64: 128, 32>}, {pipeline_mode = #tpu.pipeline_mode<synchronous>, transform_indices = @transform_8, window_bounds = array<i64: 1, 32>}, {transform_indices = @transform_9, window_bounds = array<i64: 256, 32>}]} {
    %c0 = arith.constant 0 : index
    %c0_0 = arith.constant 0 : index
    %0 = vector.load %arg1[%c0, %c0_0] : memref<256x32xf32, #tpu.memory_space<vmem>>, vector<256x32xf32>
    %c0_1 = arith.constant 0 : index
    %c0_2 = arith.constant 0 : index
    %1 = vector.load %arg2[%c0_1, %c0_2] : memref<32x128xf32, #tpu.memory_space<vmem>>, vector<32x128xf32>
    %cst = arith.constant dense<0.000000e+00> : vector<256x128xf32>
    %2 = tpu.matmul %0, %1, %cst {dimension_numbers = #tpu.dot_dimension_numbers<[1], [0], [0], [1], [0, 0, 1, 1], [], []>} : vector<256x32xf32>, vector<32x128xf32>, vector<256x128xf32> -> vector<256x128xf32>
    %c0_3 = arith.constant 0 : index
    %c0_4 = arith.constant 0 : index
    %3 = vector.load %arg3[%c0_3, %c0_4] : memref<1x128xf32, #tpu.memory_space<vmem>>, vector<1x128xf32>
    %4 = vector.broadcast %3 : vector<1x128xf32> to vector<256x128xf32>
    %5 = arith.addf %2, %4 : vector<256x128xf32>
    %cst_5 = arith.constant 0.000000e+00 : f32
    %6 = vector.broadcast %cst_5 : f32 to vector<256x128xf32>
    %7 = arith.maximumf %5, %6 : vector<256x128xf32>
    %c0_6 = arith.constant 0 : index
    %c0_7 = arith.constant 0 : index
    %8 = vector.load %arg4[%c0_6, %c0_7] : memref<128x128xf32, #tpu.memory_space<vmem>>, vector<128x128xf32>
    %cst_8 = arith.constant dense<0.000000e+00> : vector<256x128xf32>
    %9 = tpu.matmul %7, %8, %cst_8 {dimension_numbers = #tpu.dot_dimension_numbers<[1], [0], [0], [1], [0, 0, 1, 1], [], []>} : vector<256x128xf32>, vector<128x128xf32>, vector<256x128xf32> -> vector<256x128xf32>
    %c0_9 = arith.constant 0 : index
    %c0_10 = arith.constant 0 : index
    %10 = vector.load %arg5[%c0_9, %c0_10] : memref<1x128xf32, #tpu.memory_space<vmem>>, vector<1x128xf32>
    %11 = vector.broadcast %10 : vector<1x128xf32> to vector<256x128xf32>
    %12 = arith.addf %9, %11 : vector<256x128xf32>
    %c0_11 = arith.constant 0 : index
    %c0_12 = arith.constant 0 : index
    %13 = vector.load %arg6[%c0_11, %c0_12] : memref<128x128xf32, #tpu.memory_space<vmem>>, vector<128x128xf32>
    %cst_13 = arith.constant dense<0.000000e+00> : vector<256x128xf32>
    %14 = tpu.matmul %12, %13, %cst_13 {dimension_numbers = #tpu.dot_dimension_numbers<[1], [0], [0], [1], [0, 0, 1, 1], [], []>} : vector<256x128xf32>, vector<128x128xf32>, vector<256x128xf32> -> vector<256x128xf32>
    %c0_14 = arith.constant 0 : index
    %c0_15 = arith.constant 0 : index
    %15 = vector.load %arg7[%c0_14, %c0_15] : memref<1x128xf32, #tpu.memory_space<vmem>>, vector<1x128xf32>
    %16 = vector.broadcast %15 : vector<1x128xf32> to vector<256x128xf32>
    %17 = arith.addf %14, %16 : vector<256x128xf32>
    %cst_16 = arith.constant 0.000000e+00 : f32
    %18 = vector.broadcast %cst_16 : f32 to vector<256x128xf32>
    %19 = arith.maximumf %17, %18 : vector<256x128xf32>
    %c0_17 = arith.constant 0 : index
    %c0_18 = arith.constant 0 : index
    %20 = vector.load %arg8[%c0_17, %c0_18] : memref<128x32xf32, #tpu.memory_space<vmem>>, vector<128x32xf32>
    %cst_19 = arith.constant dense<0.000000e+00> : vector<256x32xf32>
    %21 = tpu.matmul %19, %20, %cst_19 {dimension_numbers = #tpu.dot_dimension_numbers<[1], [0], [0], [1], [0, 0, 1, 1], [], []>} : vector<256x128xf32>, vector<128x32xf32>, vector<256x32xf32> -> vector<256x32xf32>
    %c0_20 = arith.constant 0 : index
    %c0_21 = arith.constant 0 : index
    %22 = vector.load %arg9[%c0_20, %c0_21] : memref<1x32xf32, #tpu.memory_space<vmem>>, vector<1x32xf32>
    %23 = vector.broadcast %22 : vector<1x32xf32> to vector<256x32xf32>
    %24 = arith.addf %21, %23 : vector<256x32xf32>
    %cst_22 = arith.constant 0.000000e+00 : f32
    %25 = vector.broadcast %cst_22 : f32 to vector<256x32xf32>
    %26 = arith.maximumf %24, %25 : vector<256x32xf32>
    %c0_23 = arith.constant 0 : index
    %c0_24 = arith.constant 0 : index
    %27 = vector.load %arg10[%c0_23, %c0_24] : memref<256x32xf32, #tpu.memory_space<vmem>>, vector<256x32xf32>
    tpu.vector_store %arg10[%c0_23, %c0_24], %26 {strides = array<i32>} : memref<256x32xf32, #tpu.memory_space<vmem>>, vector<256x32xf32>,
    return
  }
  func.func @transform_0(%arg0: i32) -> (i32, i32) {
    %c0_i32 = arith.constant 0 : i32
    %c0_i32_0 = arith.constant 0 : i32
    return %arg0, %c0_i32 : i32, i32
  }
  func.func @transform_1(%arg0: i32) -> (i32, i32) {
    %c0_i32 = arith.constant 0 : i32
    %c0_i32_0 = arith.constant 0 : i32
    %c0_i32_1 = arith.constant 0 : i32
    return %c0_i32, %c0_i32_0 : i32, i32
  }
  func.func @transform_2(%arg0: i32) -> (i32, i32) {
    %c0_i32 = arith.constant 0 : i32
    %c0_i32_0 = arith.constant 0 : i32
    %c0_i32_1 = arith.constant 0 : i32
    return %c0_i32, %c0_i32_0 : i32, i32
  }
  func.func @transform_3(%arg0: i32) -> (i32, i32) {
    %c0_i32 = arith.constant 0 : i32
    %c0_i32_0 = arith.constant 0 : i32
    %c0_i32_1 = arith.constant 0 : i32
    return %c0_i32, %c0_i32_0 : i32, i32
  }
  func.func @transform_4(%arg0: i32) -> (i32, i32) {
    %c0_i32 = arith.constant 0 : i32
    %c0_i32_0 = arith.constant 0 : i32
    %c0_i32_1 = arith.constant 0 : i32
    return %c0_i32, %c0_i32_0 : i32, i32
  }
  func.func @transform_5(%arg0: i32) -> (i32, i32) {
    %c0_i32 = arith.constant 0 : i32
    %c0_i32_0 = arith.constant 0 : i32
    %c0_i32_1 = arith.constant 0 : i32
    return %c0_i32, %c0_i32_0 : i32, i32
  }
  func.func @transform_6(%arg0: i32) -> (i32, i32) {
    %c0_i32 = arith.constant 0 : i32
    %c0_i32_0 = arith.constant 0 : i32
    %c0_i32_1 = arith.constant 0 : i32
    return %c0_i32, %c0_i32_0 : i32, i32
  }
  func.func @transform_7(%arg0: i32) -> (i32, i32) {
    %c0_i32 = arith.constant 0 : i32
    %c0_i32_0 = arith.constant 0 : i32
    %c0_i32_1 = arith.constant 0 : i32
    return %c0_i32, %c0_i32_0 : i32, i32
  }
  func.func @transform_8(%arg0: i32) -> (i32, i32) {
    %c0_i32 = arith.constant 0 : i32
    %c0_i32_0 = arith.constant 0 : i32
    %c0_i32_1 = arith.constant 0 : i32
    return %c0_i32, %c0_i32_0 : i32, i32
  }
  func.func @transform_9(%arg0: i32) -> (i32, i32) {
    %c0_i32 = arith.constant 0 : i32
    %c0_i32_0 = arith.constant 0 : i32
    return %arg0, %c0_i32 : i32, i32
  }
}

</mosaic_0001>

<llo_original>
// kernel: tpu_custom_call.1
$region0: #{tpu_custom_call.1}
  #allocation0 [shape = 'u32[]', space=smem, size = 0x4, offset = 0x4, fixed_abs, tag = 'smem constant byte address 0x4 - core index']
  #allocation1 [shape = 'u32[144,128]{1,0:T(1,128)}', space=vmem, size = 0x12000, scoped, tag = 'internal scratch']
  %s0 = inlined_call_operand.vmem [shape: f32[512,32], index: 0, kind: input, shape index: {}]
  %s1 = inlined_call_operand.vmem [shape: f32[32,128], index: 1, kind: input, shape index: {}]
  %s2 = inlined_call_operand.vmem [shape: f32[1,128], index: 2, kind: input, shape index: {}]
  %s3 = inlined_call_operand.vmem [shape: f32[128,128], index: 3, kind: input, shape index: {}]
  %s4 = inlined_call_operand.vmem [shape: f32[1,128], index: 4, kind: input, shape index: {}]
  %s5 = inlined_call_operand.vmem [shape: f32[128,128], index: 5, kind: input, shape index: {}]
  %s6 = inlined_call_operand.vmem [shape: f32[1,128], index: 6, kind: input, shape index: {}]
  %s7 = inlined_call_operand.vmem [shape: f32[128,32], index: 7, kind: input, shape index: {}]
  %s8 = inlined_call_operand.vmem [shape: f32[1,32], index: 8, kind: input, shape index: {}]
  %s9 = inlined_call_operand.vmem [shape: f32[512,32], index: 9, kind: output, shape index: {}]
  %s10 = sld [smem:[#allocation0]]
  $region69: #{tpu_custom_call.1} parent=0
    _
  %s12 = ssub.s32 1, %s10
  %s13 = scalar_select 0, %s12, %s10
  loop: start=0, step=1, limit=4
  $region2: #{tpu_custom_call.1} parent=0 // loop_pre_header
    _
  $region3: #{tpu_custom_call.1} parent=0 // loop_header
    %s15 = sphi 0, %s19
    %p16 = scmp.ge.s32.totalorder %s15, 4
    %s25 = sphi 0, %s27
    %s28 = sphi 0, %s25
    %s29 = sphi 0, %s28
    %s45 = sphi 0, %s29
    %s49 = sphi 0, %s49
    %s51 = sphi 0, %s49
    %s52 = sphi 0, %s51
    %s66 = sphi 0, %s52
    %s70 = sphi 0, %s70
    %s72 = sphi 0, %s70
    %s73 = sphi 0, %s72
    %s87 = sphi 0, %s73
    %s91 = sphi 0, %s91
    %s93 = sphi 0, %s91
    %s94 = sphi 0, %s93
    %s108 = sphi 0, %s94
    %s112 = sphi 0, %s112
    %s114 = sphi 0, %s112
    %s115 = sphi 0, %s114
    %s129 = sphi 0, %s115
    %s133 = sphi 0, %s133
    %s135 = sphi 0, %s133
    %s136 = sphi 0, %s135
    %s150 = sphi 0, %s136
    %s154 = sphi 0, %s154
    %s156 = sphi 0, %s154
    %s157 = sphi 0, %s156
    %s171 = sphi 0, %s157
    %s175 = sphi 0, %s175
    %s177 = sphi 0, %s175
    %s178 = sphi 0, %s177
    %s192 = sphi 0, %s178
    %s196 = sphi 0, %s196
    %s198 = sphi 0, %s196
    %s199 = sphi 0, %s198
    %s213 = sphi 0, %s199
    %s219 = sphi 0, %s221
    %s222 = sphi 0, %s219
    %s223 = sphi 0, %s222
    %s239 = sphi 0, %s223
  $region4: #{tpu_custom_call.1} parent=0 // loop_header_branch
    %18 = sbr.rel (%p16) target = $region8
  $region5: #{tpu_custom_call.1} parent=0 // loop_body
    %s20 = ssub.s32 %s15, 1
    %s21 = ssub.s32 %s15, 2
    %s22 = sadd.s32 %s15, 1
    %s23 = ssub.s32 %s15, %s22
    %p24 = scmp.eq.s32.totalorder %s23, 0
    %s26 = sadd.s32 %s25, 1
    %s27 = scalar_select %p24, %s25, %s26
    %p30 = pneg %p24
    %p31 = scmp.eq.s32.totalorder %s15, 1
    %p32 = por %p30, %p31
    %p33 = scmp.ne.s32.totalorder %s25, %s28
    %p34 = scmp.eq.s32.totalorder %s15, 0
    %p35 = por %p33, %p34
    %p36 = scmp.ne.s32.totalorder %s25, %s28
    %p37 = scmp.eq.s32.totalorder %s20, 1
    %p38 = por %p36, %p37
    %p39 = scmp.ne.s32.totalorder %s28, %s29
    %p40 = scmp.eq.s32.totalorder %s20, 0
    %p41 = por %p39, %p40
    %p42 = scmp.ne.s32.totalorder %s28, %s29
    %p43 = scmp.eq.s32.totalorder %s21, 1
    %p44 = por %p42, %p43
    %p46 = scmp.ne.s32.totalorder %s29, %s45
    %p47 = scmp.eq.s32.totalorder %s21, 0
    %p48 = por %p46, %p47
    %s50 = sadd.s32 %s49, 1
    %p53 = scmp.eq.s32.totalorder %s15, 1
    %p54 = scmp.ne.s32.totalorder %s49, %s51
    %p55 = scmp.eq.s32.totalorder %s15, 0
    %p56 = por %p54, %p55
    %p57 = scmp.ne.s32.totalorder %s49, %s51
    %p58 = scmp.eq.s32.totalorder %s20, 1
    %p59 = por %p57, %p58
    %p60 = scmp.ne.s32.totalorder %s51, %s52
    %p61 = scmp.eq.s32.totalorder %s20, 0
    %p62 = por %p60, %p61
    %p63 = scmp.ne.s32.totalorder %s51, %s52
    %p64 = scmp.eq.s32.totalorder %s21, 1
    %p65 = por %p63, %p64
    %p67 = scmp.ne.s32.totalorder %s52, %s66
    %p68 = scmp.eq.s32.totalorder %s21, 0
    %p69 = por %p67, %p68
    %s71 = sadd.s32 %s70, 1
    %p74 = scmp.eq.s32.totalorder %s15, 1
    %p75 = scmp.ne.s32.totalorder %s70, %s72
    %p76 = scmp.eq.s32.totalorder %s15, 0
    %p77 = por %p75, %p76
    %p78 = scmp.ne.s32.totalorder %s70, %s72
    %p79 = scmp.eq.s32.totalorder %s20, 1
    %p80 = por %p78, %p79
    %p81 = scmp.ne.s32.totalorder %s72, %s73
    %p82 = scmp.eq.s32.totalorder %s20, 0
    %p83 = por %p81, %p82
    %p84 = scmp.ne.s32.totalorder %s72, %s73
    %p85 = scmp.eq.s32.totalorder %s21, 1
    %p86 = por %p84, %p85
    %p88 = scmp.ne.s32.totalorder %s73, %s87
    %p89 = scmp.eq.s32.totalorder %s21, 0
    %p90 = por %p88, %p89
    %s92 = sadd.s32 %s91, 1
    %p95 = scmp.eq.s32.totalorder %s15, 1
    %p96 = scmp.ne.s32.totalorder %s91, %s93
    %p97 = scmp.eq.s32.totalorder %s15, 0
    %p98 = por %p96, %p97
    %p99 = scmp.ne.s32.totalorder %s91, %s93
    %p100 = scmp.eq.s32.totalorder %s20, 1
    %p101 = por %p99, %p100
    %p102 = scmp.ne.s32.totalorder %s93, %s94
    %p103 = scmp.eq.s32.totalorder %s20, 0
    %p104 = por %p102, %p103
    %p105 = scmp.ne.s32.totalorder %s93, %s94
    %p106 = scmp.eq.s32.totalorder %s21, 1
    %p107 = por %p105, %p106
    %p109 = scmp.ne.s32.totalorder %s94, %s108
    %p110 = scmp.eq.s32.totalorder %s21, 0
    %p111 = por %p109, %p110
    %s113 = sadd.s32 %s112, 1
    %p116 = scmp.eq.s32.totalorder %s15, 1
    %p117 = scmp.ne.s32.totalorder %s112, %s114
    %p118 = scmp.eq.s32.totalorder %s15, 0
    %p119 = por %p117, %p118
    %p120 = scmp.ne.s32.totalorder %s112, %s114
    %p121 = scmp.eq.s32.totalorder %s20, 1
    %p122 = por %p120, %p121
    %p123 = scmp.ne.s32.totalorder %s114, %s115
    %p124 = scmp.eq.s32.totalorder %s20, 0
    %p125 = por %p123, %p124
    %p126 = scmp.ne.s32.totalorder %s114, %s115
    %p127 = scmp.eq.s32.totalorder %s21, 1
    %p128 = por %p126, %p127
    %p130 = scmp.ne.s32.totalorder %s115, %s129
    %p131 = scmp.eq.s32.totalorder %s21, 0
    %p132 = por %p130, %p131
    %s134 = sadd.s32 %s133, 1
    %p137 = scmp.eq.s32.totalorder %s15, 1
    %p138 = scmp.ne.s32.totalorder %s133, %s135
    %p139 = scmp.eq.s32.totalorder %s15, 0
    %p140 = por %p138, %p139
    %p141 = scmp.ne.s32.totalorder %s133, %s135
    %p142 = scmp.eq.s32.totalorder %s20, 1
    %p143 = por %p141, %p142
    %p144 = scmp.ne.s32.totalorder %s135, %s136
    %p145 = scmp.eq.s32.totalorder %s20, 0
    %p146 = por %p144, %p145
    %p147 = scmp.ne.s32.totalorder %s135, %s136
    %p148 = scmp.eq.s32.totalorder %s21, 1
    %p149 = por %p147, %p148
    %p151 = scmp.ne.s32.totalorder %s136, %s150
    %p152 = scmp.eq.s32.totalorder %s21, 0
    %p153 = por %p151, %p152
    %s155 = sadd.s32 %s154, 1
    %p158 = scmp.eq.s32.totalorder %s15, 1
    %p159 = scmp.ne.s32.totalorder %s154, %s156
    %p160 = scmp.eq.s32.totalorder %s15, 0
    %p161 = por %p159, %p160
    %p162 = scmp.ne.s32.totalorder %s154, %s156
    %p163 = scmp.eq.s32.totalorder %s20, 1
    %p164 = por %p162, %p163
    %p165 = scmp.ne.s32.totalorder %s156, %s157
    %p166 = scmp.eq.s32.totalorder %s20, 0
    %p167 = por %p165, %p166
    %p168 = scmp.ne.s32.totalorder %s156, %s157
    %p169 = scmp.eq.s32.totalorder %s21, 1
    %p170 = por %p168, %p169
    %p172 = scmp.ne.s32.totalorder %s157, %s171
    %p173 = scmp.eq.s32.totalorder %s21, 0
    %p174 = por %p172, %p173
    %s176 = sadd.s32 %s175, 1
    %p179 = scmp.eq.s32.totalorder %s15, 1
    %p180 = scmp.ne.s32.totalorder %s175, %s177
    %p181 = scmp.eq.s32.totalorder %s15, 0
    %p182 = por %p180, %p181
    %p183 = scmp.ne.s32.totalorder %s175, %s177
    %p184 = scmp.eq.s32.totalorder %s20, 1
    %p185 = por %p183, %p184
    %p186 = scmp.ne.s32.totalorder %s177, %s178
    %p187 = scmp.eq.s32.totalorder %s20, 0
    %p188 = por %p186, %p187
    %p189 = scmp.ne.s32.totalorder %s177, %s178
    %p190 = scmp.eq.s32.totalorder %s21, 1
    %p191 = por %p189, %p190
    %p193 = scmp.ne.s32.totalorder %s178, %s192
    %p194 = scmp.eq.s32.totalorder %s21, 0
    %p195 = por %p193, %p194
    %s197 = sadd.s32 %s196, 1
    %p200 = scmp.eq.s32.totalorder %s15, 1
    %p201 = scmp.ne.s32.totalorder %s196, %s198
    %p202 = scmp.eq.s32.totalorder %s15, 0
    %p203 = por %p201, %p202
    %p204 = scmp.ne.s32.totalorder %s196, %s198
    %p205 = scmp.eq.s32.totalorder %s20, 1
    %p206 = por %p204, %p205
    %p207 = scmp.ne.s32.totalorder %s198, %s199
    %p208 = scmp.eq.s32.totalorder %s20, 0
    %p209 = por %p207, %p208
    %p210 = scmp.ne.s32.totalorder %s198, %s199
    %p211 = scmp.eq.s32.totalorder %s21, 1
    %p212 = por %p210, %p211
    %p214 = scmp.ne.s32.totalorder %s199, %s213
    %p215 = scmp.eq.s32.totalorder %s21, 0
    %p216 = por %p214, %p215
    %s217 = ssub.s32 %s15, %s22
    %p218 = scmp.eq.s32.totalorder %s217, 0
    %s220 = sadd.s32 %s219, 1
    %s221 = scalar_select %p218, %s219, %s220
    %p224 = pneg %p218
    %p225 = scmp.eq.s32.totalorder %s15, 1
    %p226 = por %p224, %p225
    %p227 = scmp.ne.s32.totalorder %s219, %s222
    %p228 = scmp.eq.s32.totalorder %s15, 0
    %p229 = por %p227, %p228
    %p230 = scmp.ne.s32.totalorder %s219, %s222
    %p231 = scmp.eq.s32.totalorder %s20, 1
    %p232 = por %p230, %p231
    %p233 = scmp.ne.s32.totalorder %s222, %s223
    %p234 = scmp.eq.s32.totalorder %s20, 0
    %p235 = por %p233, %p234
    %p236 = scmp.ne.s32.totalorder %s222, %s223
    %p237 = scmp.eq.s32.totalorder %s21, 1
    %p238 = por %p236, %p237
    %p240 = scmp.ne.s32.totalorder %s223, %s239
    %p241 = scmp.eq.s32.totalorder %s21, 0
    %p242 = por %p240, %p241
    %p243 = scmp.le.s32.totalorder 1, %s15
    %p244 = scmp.lt.s32.totalorder %s15, 3
    %p245 = pnand %p243, %p244
    %p246 = pneg %p245
    // Predicated region
    $region9: #{tpu_custom_call.1} parent=5 // pred_check
      _
    $region10: #{tpu_custom_call.1} parent=5 // pred_check_branch
      %248 = sbr.rel (%p245) target = $region12
    $region11: #{tpu_custom_call.1} parent=5 // pred_region
      %s249 = ssub.s32 %s15, 1
      // Predicated region
      $region13: #{tpu_custom_call.1} parent=11 // pred_check
        %p250 = pneg %p62
      $region14: #{tpu_custom_call.1} parent=11 // pred_check_branch
        %252 = sbr.rel (%p250) target = $region16
      $region15: #{tpu_custom_call.1} parent=11 // pred_region
        _
      $region16: #{tpu_custom_call.1} parent=11 // pred_fallthru
        _
      // Predicated region
      $region17: #{tpu_custom_call.1} parent=11 // pred_check
        %p253 = pneg %p83
      $region18: #{tpu_custom_call.1} parent=11 // pred_check_branch
        %255 = sbr.rel (%p253) target = $region20
      $region19: #{tpu_custom_call.1} parent=11 // pred_region
        _
      $region20: #{tpu_custom_call.1} parent=11 // pred_fallthru
        _
      // Predicated region
      $region21: #{tpu_custom_call.1} parent=11 // pred_check
        %p256 = pneg %p104
      $region22: #{tpu_custom_call.1} parent=11 // pred_check_branch
        %258 = sbr.rel (%p256) target = $region24
      $region23: #{tpu_custom_call.1} parent=11 // pred_region
        _
      $region24: #{tpu_custom_call.1} parent=11 // pred_fallthru
        _
      // Predicated region
      $region25: #{tpu_custom_call.1} parent=11 // pred_check
        %p259 = pneg %p125
      $region26: #{tpu_custom_call.1} parent=11 // pred_check_branch
        %261 = sbr.rel (%p259) target = $region28
      $region27: #{tpu_custom_call.1} parent=11 // pred_region
        _
      $region28: #{tpu_custom_call.1} parent=11 // pred_fallthru
        _
      // Predicated region
      $region29: #{tpu_custom_call.1} parent=11 // pred_check
        %p262 = pneg %p146
      $region30: #{tpu_custom_call.1} parent=11 // pred_check_branch
        %264 = sbr.rel (%p262) target = $region32
      $region31: #{tpu_custom_call.1} parent=11 // pred_region
        _
      $region32: #{tpu_custom_call.1} parent=11 // pred_fallthru
        _
      // Predicated region
      $region33: #{tpu_custom_call.1} parent=11 // pred_check
        %p265 = pneg %p167
      $region34: #{tpu_custom_call.1} parent=11 // pred_check_branch
        %267 = sbr.rel (%p265) target = $region36
      $region35: #{tpu_custom_call.1} parent=11 // pred_region
        _
      $region36: #{tpu_custom_call.1} parent=11 // pred_fallthru
        _
      // Predicated region
      $region37: #{tpu_custom_call.1} parent=11 // pred_check
        %p268 = pneg %p188
      $region38: #{tpu_custom_call.1} parent=11 // pred_check_branch
        %270 = sbr.rel (%p268) target = $region40
      $region39: #{tpu_custom_call.1} parent=11 // pred_region
        _
      $region40: #{tpu_custom_call.1} parent=11 // pred_fallthru
        _
      // Predicated region
      $region41: #{tpu_custom_call.1} parent=11 // pred_check
        %p271 = pneg %p209
      $region42: #{tpu_custom_call.1} parent=11 // pred_check_branch
        %273 = sbr.rel (%p271) target = $region44
      $region43: #{tpu_custom_call.1} parent=11 // pred_region
        _
      $region44: #{tpu_custom_call.1} parent=11 // pred_fallthru
        _
    $region12: #{tpu_custom_call.1} parent=5 // pred_fallthru
      _
    %p274 = scmp.lt.s32.totalorder %s15, 2
    // Predicated region
    $region45: #{tpu_custom_call.1} parent=5 // pred_check
      %p275 = pneg %p274
    $region46: #{tpu_custom_call.1} parent=5 // pred_check_branch
      %277 = sbr.rel (%p275) target = $region48
    $region47: #{tpu_custom_call.1} parent=5 // pred_region
      // Predicated region
      $region49: #{tpu_custom_call.1} parent=47 // pred_check
        %p278 = pneg %p35
      $region50: #{tpu_custom_call.1} parent=47 // pred_check_branch
        %280 = sbr.rel (%p278) target = $region52
      $region51: #{tpu_custom_call.1} parent=47 // pred_region
        %s281 = smul.u32 32, %s15
        %p282 = scmp.lt.s32.totalorder %s281, 63
        %s283 = scalar_select %p282, %s281, 63
        %s284 = smul.addr %s283, 8
        %s285 = scalar_lea.vmem %s0, %s284
        %s286 = smul.u32 32, %s15
      $region52: #{tpu_custom_call.1} parent=47 // pred_fallthru
        _
    $region48: #{tpu_custom_call.1} parent=5 // pred_fallthru
      _
    %p287 = scmp.le.s32.totalorder 1, %s15
    %p288 = scmp.lt.s32.totalorder %s15, 3
    %p289 = pnand %p287, %p288
    %p290 = pneg %p289
    // Predicated region
    $region53: #{tpu_custom_call.1} parent=5 // pred_check
      _
    $region54: #{tpu_custom_call.1} parent=5 // pred_check_branch
      %292 = sbr.rel (%p289) target = $region56
    $region55: #{tpu_custom_call.1} parent=5 // pred_region
      %s293 = ssub.s32 %s15, 1
      %s294 = smul.u32 32, %s20
      %p295 = scmp.lt.s32.totalorder %s294, 63
      %s296 = scalar_select %p295, %s294, 63
      %s297 = smul.addr %s296, 8
      %s298 = scalar_lea.vmem %s0, %s297
      %p299 = pneg %p41
      %p300 = pneg %p38
      %p301 = pneg %p62
      %p302 = pneg %p59
      %p303 = pneg %p83
      %p304 = pneg %p80
      %p305 = pneg %p104
      %p306 = pneg %p101
      %p307 = pneg %p125
      %p308 = pneg %p122
      %p309 = pneg %p146
      %p310 = pneg %p143
      %p311 = pneg %p167
      %p312 = pneg %p164
      %p313 = pneg %p188
      %p314 = pneg %p185
      %p315 = pneg %p209
      %p316 = pneg %p206
      %p317 = pneg %p235
      %p318 = pneg %p232
      %s319 = smul.u32 32, %s20
      %p320 = scmp.lt.s32.totalorder %s319, 63
      %s321 = scalar_select %p320, %s319, 63
      %s322 = smul.addr %s321, 8
      %s323 = scalar_lea.vmem %s9, %s322
      %s324 = smul.u32 32, %s20
      %p325 = scmp.lt.s32.totalorder %s324, 63
      %s326 = scalar_select %p325, %s324, 63
      %s327 = smul.addr %s326, 8
      %s328 = scalar_lea.vmem %s0, %s327
      %s329 = smul.u32 32, %s20
      %s330 = smul.u32 32, %s20
      %p331 = scmp.lt.s32.totalorder %s330, 63
      %s332 = scalar_select %p331, %s330, 63
      %s333 = smul.addr %s332, 8
      %s334 = scalar_lea.vmem %s9, %s333
      %s335 = smul.u32 32, %s20
      %v336 = vld [vmem:[%s328] sm:$0xff]
      %v337 = vld [vmem:[%s328 + $0x8] sm:$0xff]
      %v338 = vld [vmem:[%s328 + $0x10] sm:$0xff]
      %v339 = vld [vmem:[%s328 + $0x18] sm:$0xff]
      %v340 = vld [vmem:[%s328 + $0x20] sm:$0xff]
      %v341 = vld [vmem:[%s328 + $0x28] sm:$0xff]
      %v342 = vld [vmem:[%s328 + $0x30] sm:$0xff]
      %v343 = vld [vmem:[%s328 + $0x38] sm:$0xff]
      %v344 = vld [vmem:[%s328 + $0x40] sm:$0xff]
      %v345 = vld [vmem:[%s328 + $0x48] sm:$0xff]
      %v346 = vld [vmem:[%s328 + $0x50] sm:$0xff]
      %v347 = vld [vmem:[%s328 + $0x58] sm:$0xff]
      %v348 = vld [vmem:[%s328 + $0x60] sm:$0xff]
      %v349 = vld [vmem:[%s328 + $0x68] sm:$0xff]
      %v350 = vld [vmem:[%s328 + $0x70] sm:$0xff]
      %v351 = vld [vmem:[%s328 + $0x78] sm:$0xff]
      %v352 = vld [vmem:[%s328 + $0x80] sm:$0xff]
      %v353 = vld [vmem:[%s328 + $0x88] sm:$0xff]
      %v354 = vld [vmem:[%s328 + $0x90] sm:$0xff]
      %v355 = vld [vmem:[%s328 + $0x98] sm:$0xff]
      %v356 = vld [vmem:[%s328 + $0xa0] sm:$0xff]
      %v357 = vld [vmem:[%s328 + $0xa8] sm:$0xff]
      %v358 = vld [vmem:[%s328 + $0xb0] sm:$0xff]
      %v359 = vld [vmem:[%s328 + $0xb8] sm:$0xff]
      %v360 = vld [vmem:[%s328 + $0xc0] sm:$0xff]
      %v361 = vld [vmem:[%s328 + $0xc8] sm:$0xff]
      %v362 = vld [vmem:[%s328 + $0xd0] sm:$0xff]
      %v363 = vld [vmem:[%s328 + $0xd8] sm:$0xff]
      %v364 = vld [vmem:[%s328 + $0xe0] sm:$0xff]
      %v365 = vld [vmem:[%s328 + $0xe8] sm:$0xff]
      %v366 = vld [vmem:[%s328 + $0xf0] sm:$0xff]
      %v367 = vld [vmem:[%s328 + $0xf8] sm:$0xff]
      %v368 = vld [vmem:[%s1] sm:$0xff]
      %v369 = vld [vmem:[%s1 + $0x8] sm:$0xff]
      %v370 = vld [vmem:[%s1 + $0x10] sm:$0xff]
      %v371 = vld [vmem:[%s1 + $0x18] sm:$0xff]
      %v372 = vld [vmem:[%s2] sm:$0x1]
      %v374 = vlaneseq
      %v375 = vshrl.u32 %v374, 7
      %v376 = vsub.s32 0, %v375
      %v377 = vrot.slane %v372, %v376
      %vm379 = vcmask 261120
      %v381 = vsel %vm379, %v336, 0
      %v384 = vsel %vm379, %v337, 0
      %v387 = vsel %vm379, %v338, 0
      %v390 = vsel %vm379, %v339, 0
      %v393 = vsel %vm379, %v340, 0
      %v396 = vsel %vm379, %v341, 0
      %v399 = vsel %vm379, %v342, 0
      %v402 = vsel %vm379, %v343, 0
      %v405 = vsel %vm379, %v344, 0
      %v408 = vsel %vm379, %v345, 0
      %v411 = vsel %vm379, %v346, 0
      %v414 = vsel %vm379, %v347, 0
      %v417 = vsel %vm379, %v348, 0
      %v420 = vsel %vm379, %v349, 0
      %v423 = vsel %vm379, %v350, 0
      %v426 = vsel %vm379, %v351, 0
      %v429 = vsel %vm379, %v352, 0
      %v432 = vsel %vm379, %v353, 0
      %v435 = vsel %vm379, %v354, 0
      %v438 = vsel %vm379, %v355, 0
      %v441 = vsel %vm379, %v356, 0
      %v444 = vsel %vm379, %v357, 0
      %v447 = vsel %vm379, %v358, 0
      %v450 = vsel %vm379, %v359, 0
      %v453 = vsel %vm379, %v360, 0
      %v456 = vsel %vm379, %v361, 0
      %v459 = vsel %vm379, %v362, 0
      %v462 = vsel %vm379, %v363, 0
      %v465 = vsel %vm379, %v364, 0
      %v468 = vsel %vm379, %v365, 0
      %v471 = vsel %vm379, %v366, 0
      %v474 = vsel %vm379, %v367, 0
      %476 = vmatprep.subr.mxu0 0.0
      %477 = vmatpush1.msra.mxu0 0.0
      %478 = vmatprep.subr.mxu0 0.0
      %479 = vmatpush1.msra.mxu0 0.0
      %480 = vmatprep.subr.mxu0 0.0
      %481 = vmatpush1.msra.mxu0 0.0
      %482 = vmatprep.subr.mxu0 0.0
      %483 = vmatpush1.msra.mxu0 0.0
      %484 = vmatprep.subr.mxu0 0.0
      %485 = vmatpush1.msra.mxu0 0.0
      %486 = vmatprep.subr.mxu0 0.0
      %487 = vmatpush1.msra.mxu0 0.0
      %488 = vmatprep.subr.mxu0 0.0
      %489 = vmatpush1.msra.mxu0 0.0
      %490 = vmatprep.subr.mxu0 0.0
      %491 = vmatpush1.msra.mxu0 0.0
      %492 = vmatprep.subr.mxu0 0.0
      %493 = vmatpush1.msra.mxu0 0.0
      %494 = vmatprep.subr.mxu0 0.0
      %495 = vmatpush1.msra.mxu0 0.0
      %496 = vmatprep.subr.mxu0 0.0
      %497 = vmatpush1.msra.mxu0 0.0
      %498 = vmatprep.subr.mxu0 0.0
      %499 = vmatpush1.msra.mxu0 0.0
      %500 = vmatprep.subr.mxu0 0.0
      %501 = vmatpush1.msra.mxu0 %v371
      %502 = vmatprep.subr.mxu0 0.0
      %503 = vmatpush1.msra.mxu0 %v370
      %504 = vmatprep.subr.mxu0 0.0
      %505 = vmatpush1.msra.mxu0 %v369
      %506 = vmatprep.subr.mxu0 0.0
      %507 = vmatpush1.msra.mxu0 %v368
      %508 = vmatprep.subr.mxu0 0.0
      %509 = vmatpush2.msra.mxu0 0.0
      %510 = vmatprep.subr.mxu0 0.0
      %511 = vmatpush2.msra.mxu0 0.0
      %512 = vmatprep.subr.mxu0 0.0
      %513 = vmatpush2.msra.mxu0 0.0
      %514 = vmatprep.subr.mxu0 0.0
      %515 = vmatpush2.msra.mxu0 0.0
      %516 = vmatprep.subr.mxu0 0.0
      %517 = vmatpush2.msra.mxu0 0.0
      %518 = vmatprep.subr.mxu0 0.0
      %519 = vmatpush2.msra.mxu0 0.0
      %520 = vmatprep.subr.mxu0 0.0
      %521 = vmatpush2.msra.mxu0 0.0
      %522 = vmatprep.subr.mxu0 0.0
      %523 = vmatpush2.msra.mxu0 0.0
      %524 = vmatprep.subr.mxu0 0.0
      %525 = vmatpush2.msra.mxu0 0.0
      %526 = vmatprep.subr.mxu0 0.0
      %527 = vmatpush2.msra.mxu0 0.0
      %528 = vmatprep.subr.mxu0 0.0
      %529 = vmatpush2.msra.mxu0 0.0
      %530 = vmatprep.subr.mxu0 0.0
      %531 = vmatpush2.msra.mxu0 0.0
      %532 = vmatprep.subr.mxu0 0.0
      %533 = vmatpush2.msra.mxu0 0.0
      %534 = vmatprep.subr.mxu0 0.0
      %535 = vmatpush2.msra.mxu0 0.0
      %536 = vmatprep.subr.mxu0 0.0
      %537 = vmatpush2.msra.mxu0 0.0
      %538 = vmatprep.subr.mxu0 0.0
      %539 = vmatpush2.msra.mxu0 0.0
      %540 = vmatprep.mubr.f32.mxu0 0.0
      %541 = vmatmul.mubr.f32.gmra.mxu0 %v381
      %v542 = vpop.f32.mrf.mxu0
      %v543 = vadd.f32 %v377, %v542
      %v544 = vpop.f32.mrf.mxu0
      %545 = vmatprep.mubr.f32.mxu0 0.0
      %546 = vmatmul.mubr.f32.gmra.mxu0 %v384
      %v547 = vpop.f32.mrf.mxu0
      %v548 = vadd.f32 %v377, %v547
      %v549 = vpop.f32.mrf.mxu0
      %550 = vmatprep.mubr.f32.mxu0 0.0
      %551 = vmatmul.mubr.f32.gmra.mxu0 %v387
      %v552 = vpop.f32.mrf.mxu0
      %v553 = vadd.f32 %v377, %v552
      %v554 = vpop.f32.mrf.mxu0
      %555 = vmatprep.mubr.f32.mxu0 0.0
      %556 = vmatmul.mubr.f32.gmra.mxu0 %v390
      %v557 = vpop.f32.mrf.mxu0
      %v558 = vadd.f32 %v377, %v557
      %v559 = vpop.f32.mrf.mxu0
      %560 = vmatprep.mubr.f32.mxu0 0.0
      %561 = vmatmul.mubr.f32.gmra.mxu0 %v393
      %v562 = vpop.f32.mrf.mxu0
      %v563 = vadd.f32 %v377, %v562
      %v564 = vpop.f32.mrf.mxu0
      %565 = vmatprep.mubr.f32.mxu0 0.0
      %566 = vmatmul.mubr.f32.gmra.mxu0 %v396
      %v567 = vpop.f32.mrf.mxu0
      %v568 = vadd.f32 %v377, %v567
      %v569 = vpop.f32.mrf.mxu0
      %570 = vmatprep.mubr.f32.mxu0 0.0
      %571 = vmatmul.mubr.f32.gmra.mxu0 %v399
      %v572 = vpop.f32.mrf.mxu0
      %v573 = vadd.f32 %v377, %v572
      %v574 = vpop.f32.mrf.mxu0
      %575 = vmatprep.mubr.f32.mxu0 0.0
      %576 = vmatmul.mubr.f32.gmra.mxu0 %v402
      %v577 = vpop.f32.mrf.mxu0
      %v578 = vadd.f32 %v377, %v577
      %v579 = vpop.f32.mrf.mxu0
      %580 = vmatprep.mubr.f32.mxu0 0.0
      %581 = vmatmul.mubr.f32.gmra.mxu0 %v405
      %v582 = vpop.f32.mrf.mxu0
      %v583 = vadd.f32 %v377, %v582
      %v584 = vpop.f32.mrf.mxu0
      %585 = vmatprep.mubr.f32.mxu0 0.0
      %586 = vmatmul.mubr.f32.gmra.mxu0 %v408
      %v587 = vpop.f32.mrf.mxu0
      %v588 = vadd.f32 %v377, %v587
      %v589 = vpop.f32.mrf.mxu0
      %590 = vmatprep.mubr.f32.mxu0 0.0
      %591 = vmatmul.mubr.f32.gmra.mxu0 %v411
      %v592 = vpop.f32.mrf.mxu0
      %v593 = vadd.f32 %v377, %v592
      %v594 = vpop.f32.mrf.mxu0
      %595 = vmatprep.mubr.f32.mxu0 0.0
      %596 = vmatmul.mubr.f32.gmra.mxu0 %v414
      %v597 = vpop.f32.mrf.mxu0
      %v598 = vadd.f32 %v377, %v597
      %v599 = vpop.f32.mrf.mxu0
      %600 = vmatprep.mubr.f32.mxu0 0.0
      %601 = vmatmul.mubr.f32.gmra.mxu0 %v417
      %v602 = vpop.f32.mrf.mxu0
      %v603 = vadd.f32 %v377, %v602
      %v604 = vpop.f32.mrf.mxu0
      %605 = vmatprep.mubr.f32.mxu0 0.0
      %606 = vmatmul.mubr.f32.gmra.mxu0 %v420
      %v607 = vpop.f32.mrf.mxu0
      %v608 = vadd.f32 %v377, %v607
      %v609 = vpop.f32.mrf.mxu0
      %610 = vmatprep.mubr.f32.mxu0 0.0
      %611 = vmatmul.mubr.f32.gmra.mxu0 %v423
      %v612 = vpop.f32.mrf.mxu0
      %v613 = vadd.f32 %v377, %v612
      %v614 = vpop.f32.mrf.mxu0
      %615 = vmatprep.mubr.f32.mxu0 0.0
      %616 = vmatmul.mubr.f32.gmra.mxu0 %v426
      %v617 = vpop.f32.mrf.mxu0
      %v618 = vadd.f32 %v377, %v617
      %v619 = vpop.f32.mrf.mxu0
      %620 = vmatprep.mubr.f32.mxu0 0.0
      %621 = vmatmul.mubr.f32.gmra.mxu0 %v429
      %v622 = vpop.f32.mrf.mxu0
      %v623 = vadd.f32 %v377, %v622
      %v624 = vpop.f32.mrf.mxu0
      %625 = vmatprep.mubr.f32.mxu0 0.0
      %626 = vmatmul.mubr.f32.gmra.mxu0 %v432
      %v627 = vpop.f32.mrf.mxu0
      %v628 = vadd.f32 %v377, %v627
      %v629 = vpop.f32.mrf.mxu0
      %630 = vmatprep.mubr.f32.mxu0 0.0
      %631 = vmatmul.mubr.f32.gmra.mxu0 %v435
      %v632 = vpop.f32.mrf.mxu0
      %v633 = vadd.f32 %v377, %v632
      %v634 = vpop.f32.mrf.mxu0
      %635 = vmatprep.mubr.f32.mxu0 0.0
      %636 = vmatmul.mubr.f32.gmra.mxu0 %v438
      %v637 = vpop.f32.mrf.mxu0
      %v638 = vadd.f32 %v377, %v637
      %v639 = vpop.f32.mrf.mxu0
      %640 = vmatprep.mubr.f32.mxu0 0.0
      %641 = vmatmul.mubr.f32.gmra.mxu0 %v441
      %v642 = vpop.f32.mrf.mxu0
      %v643 = vadd.f32 %v377, %v642
      %v644 = vpop.f32.mrf.mxu0
      %645 = vmatprep.mubr.f32.mxu0 0.0
      %646 = vmatmul.mubr.f32.gmra.mxu0 %v444
      %v647 = vpop.f32.mrf.mxu0
      %v648 = vadd.f32 %v377, %v647
      %v649 = vpop.f32.mrf.mxu0
      %650 = vmatprep.mubr.f32.mxu0 0.0
      %651 = vmatmul.mubr.f32.gmra.mxu0 %v447
      %v652 = vpop.f32.mrf.mxu0
      %v653 = vadd.f32 %v377, %v652
      %v654 = vpop.f32.mrf.mxu0
      %655 = vmatprep.mubr.f32.mxu0 0.0
      %656 = vmatmul.mubr.f32.gmra.mxu0 %v450
      %v657 = vpop.f32.mrf.mxu0
      %v658 = vadd.f32 %v377, %v657
      %v659 = vpop.f32.mrf.mxu0
      %660 = vmatprep.mubr.f32.mxu0 0.0
      %661 = vmatmul.mubr.f32.gmra.mxu0 %v453
      %v662 = vpop.f32.mrf.mxu0
      %v663 = vadd.f32 %v377, %v662
      %v664 = vpop.f32.mrf.mxu0
      %665 = vmatprep.mubr.f32.mxu0 0.0
      %666 = vmatmul.mubr.f32.gmra.mxu0 %v456
      %v667 = vpop.f32.mrf.mxu0
      %v668 = vadd.f32 %v377, %v667
      %v669 = vpop.f32.mrf.mxu0
      %670 = vmatprep.mubr.f32.mxu0 0.0
      %671 = vmatmul.mubr.f32.gmra.mxu0 %v459
      %v672 = vpop.f32.mrf.mxu0
      %v673 = vadd.f32 %v377, %v672
      %v674 = vpop.f32.mrf.mxu0
      %675 = vmatprep.mubr.f32.mxu0 0.0
      %676 = vmatmul.mubr.f32.gmra.mxu0 %v462
      %v677 = vpop.f32.mrf.mxu0
      %v678 = vadd.f32 %v377, %v677
      %v679 = vpop.f32.mrf.mxu0
      %680 = vmatprep.mubr.f32.mxu0 0.0
      %681 = vmatmul.mubr.f32.gmra.mxu0 %v465
      %v682 = vpop.f32.mrf.mxu0
      %v683 = vadd.f32 %v377, %v682
      %v684 = vpop.f32.mrf.mxu0
      %685 = vmatprep.mubr.f32.mxu0 0.0
      %686 = vmatmul.mubr.f32.gmra.mxu0 %v468
      %v687 = vpop.f32.mrf.mxu0
      %v688 = vadd.f32 %v377, %v687
      %v689 = vpop.f32.mrf.mxu0
      %690 = vmatprep.mubr.f32.mxu0 0.0
      %691 = vmatmul.mubr.f32.gmra.mxu0 %v471
      %v692 = vpop.f32.mrf.mxu0
      %v693 = vadd.f32 %v377, %v692
      %v694 = vpop.f32.mrf.mxu0
      %695 = vmatprep.mubr.f32.mxu0 0.0
      %696 = vmatmul.mubr.f32.gmra.mxu0 %v474
      %v697 = vpop.f32.mrf.mxu0
      %v698 = vadd.f32 %v377, %v697
      %v699 = vpop.f32.mrf.mxu0
      %700 = vdwg.mxu0
      %v701 = vmax.f32 %v543, 0.0
      %v702 = vmax.f32 %v548, 0.0
      %v703 = vmax.f32 %v553, 0.0
      %v704 = vmax.f32 %v558, 0.0
      %v705 = vmax.f32 %v563, 0.0
      %v706 = vmax.f32 %v568, 0.0
      %v707 = vmax.f32 %v573, 0.0
      %v708 = vmax.f32 %v578, 0.0
      %v709 = vmax.f32 %v583, 0.0
      %v710 = vmax.f32 %v588, 0.0
      %v711 = vmax.f32 %v593, 0.0
      %v712 = vmax.f32 %v598, 0.0
      %v713 = vmax.f32 %v603, 0.0
      %v714 = vmax.f32 %v608, 0.0
      %v715 = vmax.f32 %v613, 0.0
      %v716 = vmax.f32 %v618, 0.0
      %v717 = vmax.f32 %v623, 0.0
      %v718 = vmax.f32 %v628, 0.0
      %v719 = vmax.f32 %v633, 0.0
      %v720 = vmax.f32 %v638, 0.0
      %v721 = vmax.f32 %v643, 0.0
      %v722 = vmax.f32 %v648, 0.0
      %v723 = vmax.f32 %v653, 0.0
      %v724 = vmax.f32 %v658, 0.0
      %v725 = vmax.f32 %v663, 0.0
      %v726 = vmax.f32 %v668, 0.0
      %v727 = vmax.f32 %v673, 0.0
      %v728 = vmax.f32 %v678, 0.0
      %v729 = vmax.f32 %v683, 0.0
      %v730 = vmax.f32 %v688, 0.0
      %v731 = vmax.f32 %v693, 0.0
      %v732 = vmax.f32 %v698, 0.0
      %v733 = vld [vmem:[%s3] sm:$0xff]
      %v734 = vld [vmem:[%s3 + $0x8] sm:$0xff]
      %v735 = vld [vmem:[%s3 + $0x10] sm:$0xff]
      %v736 = vld [vmem:[%s3 + $0x18] sm:$0xff]
      %v737 = vld [vmem:[%s3 + $0x20] sm:$0xff]
      %v738 = vld [vmem:[%s3 + $0x28] sm:$0xff]
      %v739 = vld [vmem:[%s3 + $0x30] sm:$0xff]
      %v740 = vld [vmem:[%s3 + $0x38] sm:$0xff]
      %v741 = vld [vmem:[%s3 + $0x40] sm:$0xff]
      %v742 = vld [vmem:[%s3 + $0x48] sm:$0xff]
      %v743 = vld [vmem:[%s3 + $0x50] sm:$0xff]
      %v744 = vld [vmem:[%s3 + $0x58] sm:$0xff]
      %v745 = vld [vmem:[%s3 + $0x60] sm:$0xff]
      %v746 = vld [vmem:[%s3 + $0x68] sm:$0xff]
      %v747 = vld [vmem:[%s3 + $0x70] sm:$0xff]
      %v748 = vld [vmem:[%s3 + $0x78] sm:$0xff]
      %v749 = vld [vmem:[%s4] sm:$0x1]
      %v751 = vlaneseq
      %v752 = vshrl.u32 %v751, 7
      %v753 = vsub.s32 0, %v752
      %v754 = vrot.slane %v749, %v753
      %756 = vmatprep.subr.mxu0 0.0
      %757 = vmatpush1.msra.mxu0 %v748
      %758 = vmatprep.subr.mxu0 0.0
      %759 = vmatpush1.msra.mxu0 %v747
      %760 = vmatprep.subr.mxu0 0.0
      %761 = vmatpush1.msra.mxu0 %v746
      %762 = vmatprep.subr.mxu0 0.0
      %763 = vmatpush1.msra.mxu0 %v745
      %764 = vmatprep.subr.mxu0 0.0
      %765 = vmatpush1.msra.mxu0 %v744
      %766 = vmatprep.subr.mxu0 0.0
      %767 = vmatpush1.msra.mxu0 %v743
      %768 = vmatprep.subr.mxu0 0.0
      %769 = vmatpush1.msra.mxu0 %v742
      %770 = vmatprep.subr.mxu0 0.0
      %771 = vmatpush1.msra.mxu0 %v741
      %772 = vmatprep.subr.mxu0 0.0
      %773 = vmatpush1.msra.mxu0 %v740
      %774 = vmatprep.subr.mxu0 0.0
      %775 = vmatpush1.msra.mxu0 %v739
      %776 = vmatprep.subr.mxu0 0.0
      %777 = vmatpush1.msra.mxu0 %v738
      %778 = vmatprep.subr.mxu0 0.0
      %779 = vmatpush1.msra.mxu0 %v737
      %780 = vmatprep.subr.mxu0 0.0
      %781 = vmatpush1.msra.mxu0 %v736
      %782 = vmatprep.subr.mxu0 0.0
      %783 = vmatpush1.msra.mxu0 %v735
      %784 = vmatprep.subr.mxu0 0.0
      %785 = vmatpush1.msra.mxu0 %v734
      %786 = vmatprep.subr.mxu0 0.0
      %787 = vmatpush1.msra.mxu0 %v733
      %788 = vmatprep.subr.mxu0 0.0
      %789 = vmatpush2.msra.mxu0 0.0
      %790 = vmatprep.subr.mxu0 0.0
      %791 = vmatpush2.msra.mxu0 0.0
      %792 = vmatprep.subr.mxu0 0.0
      %793 = vmatpush2.msra.mxu0 0.0
      %794 = vmatprep.subr.mxu0 0.0
      %795 = vmatpush2.msra.mxu0 0.0
      %796 = vmatprep.subr.mxu0 0.0
      %797 = vmatpush2.msra.mxu0 0.0
      %798 = vmatprep.subr.mxu0 0.0
      %799 = vmatpush2.msra.mxu0 0.0
      %800 = vmatprep.subr.mxu0 0.0
      %801 = vmatpush2.msra.mxu0 0.0
      %802 = vmatprep.subr.mxu0 0.0
      %803 = vmatpush2.msra.mxu0 0.0
      %804 = vmatprep.subr.mxu0 0.0
      %805 = vmatpush2.msra.mxu0 0.0
      %806 = vmatprep.subr.mxu0 0.0
      %807 = vmatpush2.msra.mxu0 0.0
      %808 = vmatprep.subr.mxu0 0.0
      %809 = vmatpush2.msra.mxu0 0.0
      %810 = vmatprep.subr.mxu0 0.0
      %811 = vmatpush2.msra.mxu0 0.0
      %812 = vmatprep.subr.mxu0 0.0
      %813 = vmatpush2.msra.mxu0 0.0
      %814 = vmatprep.subr.mxu0 0.0
      %815 = vmatpush2.msra.mxu0 0.0
      %816 = vmatprep.subr.mxu0 0.0
      %817 = vmatpush2.msra.mxu0 0.0
      %818 = vmatprep.subr.mxu0 0.0
      %819 = vmatpush2.msra.mxu0 0.0
      %820 = vmatprep.mubr.f32.mxu0 0.0
      %821 = vmatmul.mubr.f32.gmra.mxu0 %v701
      %v822 = vpop.f32.mrf.mxu0
      %v823 = vadd.f32 %v754, %v822
      %v824 = vpop.f32.mrf.mxu0
      %825 = vmatprep.mubr.f32.mxu0 0.0
      %826 = vmatmul.mubr.f32.gmra.mxu0 %v702
      %v827 = vpop.f32.mrf.mxu0
      %v828 = vadd.f32 %v754, %v827
      %v829 = vpop.f32.mrf.mxu0
      %830 = vmatprep.mubr.f32.mxu0 0.0
      %831 = vmatmul.mubr.f32.gmra.mxu0 %v703
      %v832 = vpop.f32.mrf.mxu0
      %v833 = vadd.f32 %v754, %v832
      %v834 = vpop.f32.mrf.mxu0
      %835 = vmatprep.mubr.f32.mxu0 0.0
      %836 = vmatmul.mubr.f32.gmra.mxu0 %v704
      %v837 = vpop.f32.mrf.mxu0
      %v838 = vadd.f32 %v754, %v837
      %v839 = vpop.f32.mrf.mxu0
      %840 = vmatprep.mubr.f32.mxu0 0.0
      %841 = vmatmul.mubr.f32.gmra.mxu0 %v705
      %v842 = vpop.f32.mrf.mxu0
      %v843 = vadd.f32 %v754, %v842
      %v844 = vpop.f32.mrf.mxu0
      %845 = vmatprep.mubr.f32.mxu0 0.0
      %846 = vmatmul.mubr.f32.gmra.mxu0 %v706
      %v847 = vpop.f32.mrf.mxu0
      %v848 = vadd.f32 %v754, %v847
      %v849 = vpop.f32.mrf.mxu0
      %850 = vmatprep.mubr.f32.mxu0 0.0
      %851 = vmatmul.mubr.f32.gmra.mxu0 %v707
      %v852 = vpop.f32.mrf.mxu0
      %v853 = vadd.f32 %v754, %v852
      %v854 = vpop.f32.mrf.mxu0
      %855 = vmatprep.mubr.f32.mxu0 0.0
      %856 = vmatmul.mubr.f32.gmra.mxu0 %v708
      %v857 = vpop.f32.mrf.mxu0
      %v858 = vadd.f32 %v754, %v857
      %v859 = vpop.f32.mrf.mxu0
      %860 = vmatprep.mubr.f32.mxu0 0.0
      %861 = vmatmul.mubr.f32.gmra.mxu0 %v709
      %v862 = vpop.f32.mrf.mxu0
      %v863 = vadd.f32 %v754, %v862
      %v864 = vpop.f32.mrf.mxu0
      %865 = vmatprep.mubr.f32.mxu0 0.0
      %866 = vmatmul.mubr.f32.gmra.mxu0 %v710
      %v867 = vpop.f32.mrf.mxu0
      %v868 = vadd.f32 %v754, %v867
      %v869 = vpop.f32.mrf.mxu0
      %870 = vmatprep.mubr.f32.mxu0 0.0
      %871 = vmatmul.mubr.f32.gmra.mxu0 %v711
      %v872 = vpop.f32.mrf.mxu0
      %v873 = vadd.f32 %v754, %v872
      %v874 = vpop.f32.mrf.mxu0
      %875 = vmatprep.mubr.f32.mxu0 0.0
      %876 = vmatmul.mubr.f32.gmra.mxu0 %v712
      %v877 = vpop.f32.mrf.mxu0
      %v878 = vadd.f32 %v754, %v877
      %v879 = vpop.f32.mrf.mxu0
      %880 = vmatprep.mubr.f32.mxu0 0.0
      %881 = vmatmul.mubr.f32.gmra.mxu0 %v713
      %v882 = vpop.f32.mrf.mxu0
      %v883 = vadd.f32 %v754, %v882
      %v884 = vpop.f32.mrf.mxu0
      %885 = vmatprep.mubr.f32.mxu0 0.0
      %886 = vmatmul.mubr.f32.gmra.mxu0 %v714
      %v887 = vpop.f32.mrf.mxu0
      %v888 = vadd.f32 %v754, %v887
      %v889 = vpop.f32.mrf.mxu0
      %890 = vmatprep.mubr.f32.mxu0 0.0
      %891 = vmatmul.mubr.f32.gmra.mxu0 %v715
      %v892 = vpop.f32.mrf.mxu0
      %v893 = vadd.f32 %v754, %v892
      %v894 = vpop.f32.mrf.mxu0
      %895 = vmatprep.mubr.f32.mxu0 0.0
      %896 = vmatmul.mubr.f32.gmra.mxu0 %v716
      %v897 = vpop.f32.mrf.mxu0
      %v898 = vadd.f32 %v754, %v897
      %v899 = vpop.f32.mrf.mxu0
      %900 = vmatprep.mubr.f32.mxu0 0.0
      %901 = vmatmul.mubr.f32.gmra.mxu0 %v717
      %v902 = vpop.f32.mrf.mxu0
      %v903 = vadd.f32 %v754, %v902
      %v904 = vpop.f32.mrf.mxu0
      %905 = vmatprep.mubr.f32.mxu0 0.0
      %906 = vmatmul.mubr.f32.gmra.mxu0 %v718
      %v907 = vpop.f32.mrf.mxu0
      %v908 = vadd.f32 %v754, %v907
      %v909 = vpop.f32.mrf.mxu0
      %910 = vmatprep.mubr.f32.mxu0 0.0
      %911 = vmatmul.mubr.f32.gmra.mxu0 %v719
      %v912 = vpop.f32.mrf.mxu0
      %v913 = vadd.f32 %v754, %v912
      %v914 = vpop.f32.mrf.mxu0
      %915 = vmatprep.mubr.f32.mxu0 0.0
      %916 = vmatmul.mubr.f32.gmra.mxu0 %v720
      %v917 = vpop.f32.mrf.mxu0
      %v918 = vadd.f32 %v754, %v917
      %v919 = vpop.f32.mrf.mxu0
      %920 = vmatprep.mubr.f32.mxu0 0.0
      %921 = vmatmul.mubr.f32.gmra.mxu0 %v721
      %v922 = vpop.f32.mrf.mxu0
      %v923 = vadd.f32 %v754, %v922
      %v924 = vpop.f32.mrf.mxu0
      %925 = vmatprep.mubr.f32.mxu0 0.0
      %926 = vmatmul.mubr.f32.gmra.mxu0 %v722
      %v927 = vpop.f32.mrf.mxu0
      %v928 = vadd.f32 %v754, %v927
      %v929 = vpop.f32.mrf.mxu0
      %930 = vmatprep.mubr.f32.mxu0 0.0
      %931 = vmatmul.mubr.f32.gmra.mxu0 %v723
      %v932 = vpop.f32.mrf.mxu0
      %v933 = vadd.f32 %v754, %v932
      %v934 = vpop.f32.mrf.mxu0
      %935 = vmatprep.mubr.f32.mxu0 0.0
      %936 = vmatmul.mubr.f32.gmra.mxu0 %v724
      %v937 = vpop.f32.mrf.mxu0
      %v938 = vadd.f32 %v754, %v937
      %v939 = vpop.f32.mrf.mxu0
      %940 = vmatprep.mubr.f32.mxu0 0.0
      %941 = vmatmul.mubr.f32.gmra.mxu0 %v725
      %v942 = vpop.f32.mrf.mxu0
      %v943 = vadd.f32 %v754, %v942
      %v944 = vpop.f32.mrf.mxu0
      %945 = vmatprep.mubr.f32.mxu0 0.0
      %946 = vmatmul.mubr.f32.gmra.mxu0 %v726
      %v947 = vpop.f32.mrf.mxu0
      %v948 = vadd.f32 %v754, %v947
      %v949 = vpop.f32.mrf.mxu0
      %950 = vmatprep.mubr.f32.mxu0 0.0
      %951 = vmatmul.mubr.f32.gmra.mxu0 %v727
      %v952 = vpop.f32.mrf.mxu0
      %v953 = vadd.f32 %v754, %v952
      %v954 = vpop.f32.mrf.mxu0
      %955 = vmatprep.mubr.f32.mxu0 0.0
      %956 = vmatmul.mubr.f32.gmra.mxu0 %v728
      %v957 = vpop.f32.mrf.mxu0
      %v958 = vadd.f32 %v754, %v957
      %v959 = vpop.f32.mrf.mxu0
      %960 = vmatprep.mubr.f32.mxu0 0.0
      %961 = vmatmul.mubr.f32.gmra.mxu0 %v729
      %v962 = vpop.f32.mrf.mxu0
      %v963 = vadd.f32 %v754, %v962
      %v964 = vpop.f32.mrf.mxu0
      %965 = vmatprep.mubr.f32.mxu0 0.0
      %966 = vmatmul.mubr.f32.gmra.mxu0 %v730
      %v967 = vpop.f32.mrf.mxu0
      %v968 = vadd.f32 %v754, %v967
      %v969 = vpop.f32.mrf.mxu0
      %970 = vmatprep.mubr.f32.mxu0 0.0
      %971 = vmatmul.mubr.f32.gmra.mxu0 %v731
      %v972 = vpop.f32.mrf.mxu0
      %v973 = vadd.f32 %v754, %v972
      %v974 = vpop.f32.mrf.mxu0
      %975 = vmatprep.mubr.f32.mxu0 0.0
      %976 = vmatmul.mubr.f32.gmra.mxu0 %v732
      %v977 = vpop.f32.mrf.mxu0
      %v978 = vadd.f32 %v754, %v977
      %v979 = vpop.f32.mrf.mxu0
      %980 = vdwg.mxu0
      %v981 = vld [vmem:[%s5] sm:$0xff]
      %v982 = vld [vmem:[%s5 + $0x8] sm:$0xff]
      %v983 = vld [vmem:[%s5 + $0x10] sm:$0xff]
      %v984 = vld [vmem:[%s5 + $0x18] sm:$0xff]
      %v985 = vld [vmem:[%s5 + $0x20] sm:$0xff]
      %v986 = vld [vmem:[%s5 + $0x28] sm:$0xff]
      %v987 = vld [vmem:[%s5 + $0x30] sm:$0xff]
      %v988 = vld [vmem:[%s5 + $0x38] sm:$0xff]
      %v989 = vld [vmem:[%s5 + $0x40] sm:$0xff]
      %v990 = vld [vmem:[%s5 + $0x48] sm:$0xff]
      %v991 = vld [vmem:[%s5 + $0x50] sm:$0xff]
      %v992 = vld [vmem:[%s5 + $0x58] sm:$0xff]
      %v993 = vld [vmem:[%s5 + $0x60] sm:$0xff]
      %v994 = vld [vmem:[%s5 + $0x68] sm:$0xff]
      %v995 = vld [vmem:[%s5 + $0x70] sm:$0xff]
      %v996 = vld [vmem:[%s5 + $0x78] sm:$0xff]
      %v997 = vld [vmem:[%s6] sm:$0x1]
      %v999 = vlaneseq
      %v1000 = vshrl.u32 %v999, 7
      %v1001 = vsub.s32 0, %v1000
      %v1002 = vrot.slane %v997, %v1001
      %1004 = vmatprep.subr.mxu0 0.0
      %1005 = vmatpush1.msra.mxu0 %v996
      %1006 = vmatprep.subr.mxu0 0.0
      %1007 = vmatpush1.msra.mxu0 %v995
      %1008 = vmatprep.subr.mxu0 0.0
      %1009 = vmatpush1.msra.mxu0 %v994
      %1010 = vmatprep.subr.mxu0 0.0
      %1011 = vmatpush1.msra.mxu0 %v993
      %1012 = vmatprep.subr.mxu0 0.0
      %1013 = vmatpush1.msra.mxu0 %v992
      %1014 = vmatprep.subr.mxu0 0.0
      %1015 = vmatpush1.msra.mxu0 %v991
      %1016 = vmatprep.subr.mxu0 0.0
      %1017 = vmatpush1.msra.mxu0 %v990
      %1018 = vmatprep.subr.mxu0 0.0
      %1019 = vmatpush1.msra.mxu0 %v989
      %1020 = vmatprep.subr.mxu0 0.0
      %1021 = vmatpush1.msra.mxu0 %v988
      %1022 = vmatprep.subr.mxu0 0.0
      %1023 = vmatpush1.msra.mxu0 %v987
      %1024 = vmatprep.subr.mxu0 0.0
      %1025 = vmatpush1.msra.mxu0 %v986
      %1026 = vmatprep.subr.mxu0 0.0
      %1027 = vmatpush1.msra.mxu0 %v985
      %1028 = vmatprep.subr.mxu0 0.0
      %1029 = vmatpush1.msra.mxu0 %v984
      %1030 = vmatprep.subr.mxu0 0.0
      %1031 = vmatpush1.msra.mxu0 %v983
      %1032 = vmatprep.subr.mxu0 0.0
      %1033 = vmatpush1.msra.mxu0 %v982
      %1034 = vmatprep.subr.mxu0 0.0
      %1035 = vmatpush1.msra.mxu0 %v981
      %1036 = vmatprep.subr.mxu0 0.0
      %1037 = vmatpush2.msra.mxu0 0.0
      %1038 = vmatprep.subr.mxu0 0.0
      %1039 = vmatpush2.msra.mxu0 0.0
      %1040 = vmatprep.subr.mxu0 0.0
      %1041 = vmatpush2.msra.mxu0 0.0
      %1042 = vmatprep.subr.mxu0 0.0
      %1043 = vmatpush2.msra.mxu0 0.0
      %1044 = vmatprep.subr.mxu0 0.0
      %1045 = vmatpush2.msra.mxu0 0.0
      %1046 = vmatprep.subr.mxu0 0.0
      %1047 = vmatpush2.msra.mxu0 0.0
      %1048 = vmatprep.subr.mxu0 0.0
      %1049 = vmatpush2.msra.mxu0 0.0
      %1050 = vmatprep.subr.mxu0 0.0
      %1051 = vmatpush2.msra.mxu0 0.0
      %1052 = vmatprep.subr.mxu0 0.0
      %1053 = vmatpush2.msra.mxu0 0.0
      %1054 = vmatprep.subr.mxu0 0.0
      %1055 = vmatpush2.msra.mxu0 0.0
      %1056 = vmatprep.subr.mxu0 0.0
      %1057 = vmatpush2.msra.mxu0 0.0
      %1058 = vmatprep.subr.mxu0 0.0
      %1059 = vmatpush2.msra.mxu0 0.0
      %1060 = vmatprep.subr.mxu0 0.0
      %1061 = vmatpush2.msra.mxu0 0.0
      %1062 = vmatprep.subr.mxu0 0.0
      %1063 = vmatpush2.msra.mxu0 0.0
      %1064 = vmatprep.subr.mxu0 0.0
      %1065 = vmatpush2.msra.mxu0 0.0
      %1066 = vmatprep.subr.mxu0 0.0
      %1067 = vmatpush2.msra.mxu0 0.0
      %1068 = vmatprep.mubr.f32.mxu0 0.0
      %1069 = vmatmul.mubr.f32.gmra.mxu0 %v823
      %v1070 = vpop.f32.mrf.mxu0
      %v1071 = vadd.f32 %v1002, %v1070
      %v1072 = vpop.f32.mrf.mxu0
      %1073 = vmatprep.mubr.f32.mxu0 0.0
      %1074 = vmatmul.mubr.f32.gmra.mxu0 %v828
      %v1075 = vpop.f32.mrf.mxu0
      %v1076 = vadd.f32 %v1002, %v1075
      %v1077 = vpop.f32.mrf.mxu0
      %1078 = vmatprep.mubr.f32.mxu0 0.0
      %1079 = vmatmul.mubr.f32.gmra.mxu0 %v833
      %v1080 = vpop.f32.mrf.mxu0
      %v1081 = vadd.f32 %v1002, %v1080
      %v1082 = vpop.f32.mrf.mxu0
      %1083 = vmatprep.mubr.f32.mxu0 0.0
      %1084 = vmatmul.mubr.f32.gmra.mxu0 %v838
      %v1085 = vpop.f32.mrf.mxu0
      %v1086 = vadd.f32 %v1002, %v1085
      %v1087 = vpop.f32.mrf.mxu0
      %1088 = vmatprep.mubr.f32.mxu0 0.0
      %1089 = vmatmul.mubr.f32.gmra.mxu0 %v843
      %v1090 = vpop.f32.mrf.mxu0
      %v1091 = vadd.f32 %v1002, %v1090
      %v1092 = vpop.f32.mrf.mxu0
      %1093 = vmatprep.mubr.f32.mxu0 0.0
      %1094 = vmatmul.mubr.f32.gmra.mxu0 %v848
      %v1095 = vpop.f32.mrf.mxu0
      %v1096 = vadd.f32 %v1002, %v1095
      %v1097 = vpop.f32.mrf.mxu0
      %1098 = vmatprep.mubr.f32.mxu0 0.0
      %1099 = vmatmul.mubr.f32.gmra.mxu0 %v853
      %v1100 = vpop.f32.mrf.mxu0
      %v1101 = vadd.f32 %v1002, %v1100
      %v1102 = vpop.f32.mrf.mxu0
      %1103 = vmatprep.mubr.f32.mxu0 0.0
      %1104 = vmatmul.mubr.f32.gmra.mxu0 %v858
      %v1105 = vpop.f32.mrf.mxu0
      %v1106 = vadd.f32 %v1002, %v1105
      %v1107 = vpop.f32.mrf.mxu0
      %1108 = vmatprep.mubr.f32.mxu0 0.0
      %1109 = vmatmul.mubr.f32.gmra.mxu0 %v863
      %v1110 = vpop.f32.mrf.mxu0
      %v1111 = vadd.f32 %v1002, %v1110
      %v1112 = vpop.f32.mrf.mxu0
      %1113 = vmatprep.mubr.f32.mxu0 0.0
      %1114 = vmatmul.mubr.f32.gmra.mxu0 %v868
      %v1115 = vpop.f32.mrf.mxu0
      %v1116 = vadd.f32 %v1002, %v1115
      %v1117 = vpop.f32.mrf.mxu0
      %1118 = vmatprep.mubr.f32.mxu0 0.0
      %1119 = vmatmul.mubr.f32.gmra.mxu0 %v873
      %v1120 = vpop.f32.mrf.mxu0
      %v1121 = vadd.f32 %v1002, %v1120
      %v1122 = vpop.f32.mrf.mxu0
      %1123 = vmatprep.mubr.f32.mxu0 0.0
      %1124 = vmatmul.mubr.f32.gmra.mxu0 %v878
      %v1125 = vpop.f32.mrf.mxu0
      %v1126 = vadd.f32 %v1002, %v1125
      %v1127 = vpop.f32.mrf.mxu0
      %1128 = vmatprep.mubr.f32.mxu0 0.0
      %1129 = vmatmul.mubr.f32.gmra.mxu0 %v883
      %v1130 = vpop.f32.mrf.mxu0
      %v1131 = vadd.f32 %v1002, %v1130
      %v1132 = vpop.f32.mrf.mxu0
      %1133 = vmatprep.mubr.f32.mxu0 0.0
      %1134 = vmatmul.mubr.f32.gmra.mxu0 %v888
      %v1135 = vpop.f32.mrf.mxu0
      %v1136 = vadd.f32 %v1002, %v1135
      %v1137 = vpop.f32.mrf.mxu0
      %1138 = vmatprep.mubr.f32.mxu0 0.0
      %1139 = vmatmul.mubr.f32.gmra.mxu0 %v893
      %v1140 = vpop.f32.mrf.mxu0
      %v1141 = vadd.f32 %v1002, %v1140
      %v1142 = vpop.f32.mrf.mxu0
      %1143 = vmatprep.mubr.f32.mxu0 0.0
      %1144 = vmatmul.mubr.f32.gmra.mxu0 %v898
      %v1145 = vpop.f32.mrf.mxu0
      %v1146 = vadd.f32 %v1002, %v1145
      %v1147 = vpop.f32.mrf.mxu0
      %1148 = vmatprep.mubr.f32.mxu0 0.0
      %1149 = vmatmul.mubr.f32.gmra.mxu0 %v903
      %v1150 = vpop.f32.mrf.mxu0
      %v1151 = vadd.f32 %v1002, %v1150
      %v1152 = vpop.f32.mrf.mxu0
      %1153 = vmatprep.mubr.f32.mxu0 0.0
      %1154 = vmatmul.mubr.f32.gmra.mxu0 %v908
      %v1155 = vpop.f32.mrf.mxu0
      %v1156 = vadd.f32 %v1002, %v1155
      %v1157 = vpop.f32.mrf.mxu0
      %1158 = vmatprep.mubr.f32.mxu0 0.0
      %1159 = vmatmul.mubr.f32.gmra.mxu0 %v913
      %v1160 = vpop.f32.mrf.mxu0
      %v1161 = vadd.f32 %v1002, %v1160
      %v1162 = vpop.f32.mrf.mxu0
      %1163 = vmatprep.mubr.f32.mxu0 0.0
      %1164 = vmatmul.mubr.f32.gmra.mxu0 %v918
      %v1165 = vpop.f32.mrf.mxu0
      %v1166 = vadd.f32 %v1002, %v1165
      %v1167 = vpop.f32.mrf.mxu0
      %1168 = vmatprep.mubr.f32.mxu0 0.0
      %1169 = vmatmul.mubr.f32.gmra.mxu0 %v923
      %v1170 = vpop.f32.mrf.mxu0
      %v1171 = vadd.f32 %v1002, %v1170
      %v1172 = vpop.f32.mrf.mxu0
      %1173 = vmatprep.mubr.f32.mxu0 0.0
      %1174 = vmatmul.mubr.f32.gmra.mxu0 %v928
      %v1175 = vpop.f32.mrf.mxu0
      %v1176 = vadd.f32 %v1002, %v1175
      %v1177 = vpop.f32.mrf.mxu0
      %1178 = vmatprep.mubr.f32.mxu0 0.0
      %1179 = vmatmul.mubr.f32.gmra.mxu0 %v933
      %v1180 = vpop.f32.mrf.mxu0
      %v1181 = vadd.f32 %v1002, %v1180
      %v1182 = vpop.f32.mrf.mxu0
      %1183 = vmatprep.mubr.f32.mxu0 0.0
      %1184 = vmatmul.mubr.f32.gmra.mxu0 %v938
      %v1185 = vpop.f32.mrf.mxu0
      %v1186 = vadd.f32 %v1002, %v1185
      %v1187 = vpop.f32.mrf.mxu0
      %1188 = vmatprep.mubr.f32.mxu0 0.0
      %1189 = vmatmul.mubr.f32.gmra.mxu0 %v943
      %v1190 = vpop.f32.mrf.mxu0
      %v1191 = vadd.f32 %v1002, %v1190
      %v1192 = vpop.f32.mrf.mxu0
      %1193 = vmatprep.mubr.f32.mxu0 0.0
      %1194 = vmatmul.mubr.f32.gmra.mxu0 %v948
      %v1195 = vpop.f32.mrf.mxu0
      %v1196 = vadd.f32 %v1002, %v1195
      %v1197 = vpop.f32.mrf.mxu0
      %1198 = vmatprep.mubr.f32.mxu0 0.0
      %1199 = vmatmul.mubr.f32.gmra.mxu0 %v953
      %v1200 = vpop.f32.mrf.mxu0
      %v1201 = vadd.f32 %v1002, %v1200
      %v1202 = vpop.f32.mrf.mxu0
      %1203 = vmatprep.mubr.f32.mxu0 0.0
      %1204 = vmatmul.mubr.f32.gmra.mxu0 %v958
      %v1205 = vpop.f32.mrf.mxu0
      %v1206 = vadd.f32 %v1002, %v1205
      %v1207 = vpop.f32.mrf.mxu0
      %1208 = vmatprep.mubr.f32.mxu0 0.0
      %1209 = vmatmul.mubr.f32.gmra.mxu0 %v963
      %v1210 = vpop.f32.mrf.mxu0
      %v1211 = vadd.f32 %v1002, %v1210
      %v1212 = vpop.f32.mrf.mxu0
      %1213 = vmatprep.mubr.f32.mxu0 0.0
      %1214 = vmatmul.mubr.f32.gmra.mxu0 %v968
      %v1215 = vpop.f32.mrf.mxu0
      %v1216 = vadd.f32 %v1002, %v1215
      %v1217 = vpop.f32.mrf.mxu0
      %1218 = vmatprep.mubr.f32.mxu0 0.0
      %1219 = vmatmul.mubr.f32.gmra.mxu0 %v973
      %v1220 = vpop.f32.mrf.mxu0
      %v1221 = vadd.f32 %v1002, %v1220
      %v1222 = vpop.f32.mrf.mxu0
      %1223 = vmatprep.mubr.f32.mxu0 0.0
      %1224 = vmatmul.mubr.f32.gmra.mxu0 %v978
      %v1225 = vpop.f32.mrf.mxu0
      %v1226 = vadd.f32 %v1002, %v1225
      %v1227 = vpop.f32.mrf.mxu0
      %1228 = vdwg.mxu0
      %v1229 = vmax.f32 %v1071, 0.0
      %v1230 = vmax.f32 %v1076, 0.0
      %v1231 = vmax.f32 %v1081, 0.0
      %v1232 = vmax.f32 %v1086, 0.0
      %v1233 = vmax.f32 %v1091, 0.0
      %v1234 = vmax.f32 %v1096, 0.0
      %v1235 = vmax.f32 %v1101, 0.0
      %v1236 = vmax.f32 %v1106, 0.0
      %v1237 = vmax.f32 %v1111, 0.0
      %v1238 = vmax.f32 %v1116, 0.0
      %v1239 = vmax.f32 %v1121, 0.0
      %v1240 = vmax.f32 %v1126, 0.0
      %v1241 = vmax.f32 %v1131, 0.0
      %v1242 = vmax.f32 %v1136, 0.0
      %v1243 = vmax.f32 %v1141, 0.0
      %v1244 = vmax.f32 %v1146, 0.0
      %v1245 = vmax.f32 %v1151, 0.0
      %v1246 = vmax.f32 %v1156, 0.0
      %v1247 = vmax.f32 %v1161, 0.0
      %v1248 = vmax.f32 %v1166, 0.0
      %v1249 = vmax.f32 %v1171, 0.0
      %v1250 = vmax.f32 %v1176, 0.0
      %v1251 = vmax.f32 %v1181, 0.0
      %v1252 = vmax.f32 %v1186, 0.0
      %v1253 = vmax.f32 %v1191, 0.0
      %v1254 = vmax.f32 %v1196, 0.0
      %v1255 = vmax.f32 %v1201, 0.0
      %v1256 = vmax.f32 %v1206, 0.0
      %v1257 = vmax.f32 %v1211, 0.0
      %v1258 = vmax.f32 %v1216, 0.0
      %v1259 = vmax.f32 %v1221, 0.0
      %v1260 = vmax.f32 %v1226, 0.0
      %v1261 = vld [vmem:[%s7] sm:$0xff]
      %v1262 = vld [vmem:[%s7 + $0x8] sm:$0xff]
      %v1263 = vld [vmem:[%s7 + $0x10] sm:$0xff]
      %v1264 = vld [vmem:[%s7 + $0x18] sm:$0xff]
      %v1265 = vld [vmem:[%s7 + $0x20] sm:$0xff]
      %v1266 = vld [vmem:[%s7 + $0x28] sm:$0xff]
      %v1267 = vld [vmem:[%s7 + $0x30] sm:$0xff]
      %v1268 = vld [vmem:[%s7 + $0x38] sm:$0xff]
      %v1269 = vld [vmem:[%s7 + $0x40] sm:$0xff]
      %v1270 = vld [vmem:[%s7 + $0x48] sm:$0xff]
      %v1271 = vld [vmem:[%s7 + $0x50] sm:$0xff]
      %v1272 = vld [vmem:[%s7 + $0x58] sm:$0xff]
      %v1273 = vld [vmem:[%s7 + $0x60] sm:$0xff]
      %v1274 = vld [vmem:[%s7 + $0x68] sm:$0xff]
      %v1275 = vld [vmem:[%s7 + $0x70] sm:$0xff]
      %v1276 = vld [vmem:[%s7 + $0x78] sm:$0xff]
      %v1277 = vld [vmem:[%s8] sm:$0x1]
      %v1279 = vlaneseq
      %v1280 = vshrl.u32 %v1279, 7
      %v1281 = vsub.s32 0, %v1280
      %v1282 = vrot.slane %v1277, %v1281
      %1284 = vmatprep.subr.mxu0 0.0
      %1285 = vmatpush1.msra.mxu0 %v1276
      %1286 = vmatprep.subr.mxu0 0.0
      %1287 = vmatpush1.msra.mxu0 %v1275
      %1288 = vmatprep.subr.mxu0 0.0
      %1289 = vmatpush1.msra.mxu0 %v1274
      %1290 = vmatprep.subr.mxu0 0.0
      %1291 = vmatpush1.msra.mxu0 %v1273
      %1292 = vmatprep.subr.mxu0 0.0
      %1293 = vmatpush1.msra.mxu0 %v1272
      %1294 = vmatprep.subr.mxu0 0.0
      %1295 = vmatpush1.msra.mxu0 %v1271
      %1296 = vmatprep.subr.mxu0 0.0
      %1297 = vmatpush1.msra.mxu0 %v1270
      %1298 = vmatprep.subr.mxu0 0.0
      %1299 = vmatpush1.msra.mxu0 %v1269
      %1300 = vmatprep.subr.mxu0 0.0
      %1301 = vmatpush1.msra.mxu0 %v1268
      %1302 = vmatprep.subr.mxu0 0.0
      %1303 = vmatpush1.msra.mxu0 %v1267
      %1304 = vmatprep.subr.mxu0 0.0
      %1305 = vmatpush1.msra.mxu0 %v1266
      %1306 = vmatprep.subr.mxu0 0.0
      %1307 = vmatpush1.msra.mxu0 %v1265
      %1308 = vmatprep.subr.mxu0 0.0
      %1309 = vmatpush1.msra.mxu0 %v1264
      %1310 = vmatprep.subr.mxu0 0.0
      %1311 = vmatpush1.msra.mxu0 %v1263
      %1312 = vmatprep.subr.mxu0 0.0
      %1313 = vmatpush1.msra.mxu0 %v1262
      %1314 = vmatprep.subr.mxu0 0.0
      %1315 = vmatpush1.msra.mxu0 %v1261
      %1316 = vmatprep.subr.mxu0 0.0
      %1317 = vmatpush2.msra.mxu0 0.0
      %1318 = vmatprep.subr.mxu0 0.0
      %1319 = vmatpush2.msra.mxu0 0.0
      %1320 = vmatprep.subr.mxu0 0.0
      %1321 = vmatpush2.msra.mxu0 0.0
      %1322 = vmatprep.subr.mxu0 0.0
      %1323 = vmatpush2.msra.mxu0 0.0
      %1324 = vmatprep.subr.mxu0 0.0
      %1325 = vmatpush2.msra.mxu0 0.0
      %1326 = vmatprep.subr.mxu0 0.0
      %1327 = vmatpush2.msra.mxu0 0.0
      %1328 = vmatprep.subr.mxu0 0.0
      %1329 = vmatpush2.msra.mxu0 0.0
      %1330 = vmatprep.subr.mxu0 0.0
      %1331 = vmatpush2.msra.mxu0 0.0
      %1332 = vmatprep.subr.mxu0 0.0
      %1333 = vmatpush2.msra.mxu0 0.0
      %1334 = vmatprep.subr.mxu0 0.0
      %1335 = vmatpush2.msra.mxu0 0.0
      %1336 = vmatprep.subr.mxu0 0.0
      %1337 = vmatpush2.msra.mxu0 0.0
      %1338 = vmatprep.subr.mxu0 0.0
      %1339 = vmatpush2.msra.mxu0 0.0
      %1340 = vmatprep.subr.mxu0 0.0
      %1341 = vmatpush2.msra.mxu0 0.0
      %1342 = vmatprep.subr.mxu0 0.0
      %1343 = vmatpush2.msra.mxu0 0.0
      %1344 = vmatprep.subr.mxu0 0.0
      %1345 = vmatpush2.msra.mxu0 0.0
      %1346 = vmatprep.subr.mxu0 0.0
      %1347 = vmatpush2.msra.mxu0 0.0
      %1348 = vmatprep.mubr.f32.mxu0 0.0
      %1349 = vmatmul.mubr.f32.gmra.mxu0 %v1229
      %v1350 = vpop.f32.mrf.mxu0
      %v1351 = vadd.f32 %v1282, %v1350
      %v1352 = vpop.f32.mrf.mxu0
      %1353 = vmatprep.mubr.f32.mxu0 0.0
      %1354 = vmatmul.mubr.f32.gmra.mxu0 %v1230
      %v1355 = vpop.f32.mrf.mxu0
      %v1356 = vadd.f32 %v1282, %v1355
      %v1357 = vpop.f32.mrf.mxu0
      %1358 = vmatprep.mubr.f32.mxu0 0.0
      %1359 = vmatmul.mubr.f32.gmra.mxu0 %v1231
      %v1360 = vpop.f32.mrf.mxu0
      %v1361 = vadd.f32 %v1282, %v1360
      %v1362 = vpop.f32.mrf.mxu0
      %1363 = vmatprep.mubr.f32.mxu0 0.0
      %1364 = vmatmul.mubr.f32.gmra.mxu0 %v1232
      %v1365 = vpop.f32.mrf.mxu0
      %v1366 = vadd.f32 %v1282, %v1365
      %v1367 = vpop.f32.mrf.mxu0
      %1368 = vmatprep.mubr.f32.mxu0 0.0
      %1369 = vmatmul.mubr.f32.gmra.mxu0 %v1233
      %v1370 = vpop.f32.mrf.mxu0
      %v1371 = vadd.f32 %v1282, %v1370
      %v1372 = vpop.f32.mrf.mxu0
      %1373 = vmatprep.mubr.f32.mxu0 0.0
      %1374 = vmatmul.mubr.f32.gmra.mxu0 %v1234
      %v1375 = vpop.f32.mrf.mxu0
      %v1376 = vadd.f32 %v1282, %v1375
      %v1377 = vpop.f32.mrf.mxu0
      %1378 = vmatprep.mubr.f32.mxu0 0.0
      %1379 = vmatmul.mubr.f32.gmra.mxu0 %v1235
      %v1380 = vpop.f32.mrf.mxu0
      %v1381 = vadd.f32 %v1282, %v1380
      %v1382 = vpop.f32.mrf.mxu0
      %1383 = vmatprep.mubr.f32.mxu0 0.0
      %1384 = vmatmul.mubr.f32.gmra.mxu0 %v1236
      %v1385 = vpop.f32.mrf.mxu0
      %v1386 = vadd.f32 %v1282, %v1385
      %v1387 = vpop.f32.mrf.mxu0
      %1388 = vmatprep.mubr.f32.mxu0 0.0
      %1389 = vmatmul.mubr.f32.gmra.mxu0 %v1237
      %v1390 = vpop.f32.mrf.mxu0
      %v1391 = vadd.f32 %v1282, %v1390
      %v1392 = vpop.f32.mrf.mxu0
      %1393 = vmatprep.mubr.f32.mxu0 0.0
      %1394 = vmatmul.mubr.f32.gmra.mxu0 %v1238
      %v1395 = vpop.f32.mrf.mxu0
      %v1396 = vadd.f32 %v1282, %v1395
      %v1397 = vpop.f32.mrf.mxu0
      %1398 = vmatprep.mubr.f32.mxu0 0.0
      %1399 = vmatmul.mubr.f32.gmra.mxu0 %v1239
      %v1400 = vpop.f32.mrf.mxu0
      %v1401 = vadd.f32 %v1282, %v1400
      %v1402 = vpop.f32.mrf.mxu0
      %1403 = vmatprep.mubr.f32.mxu0 0.0
      %1404 = vmatmul.mubr.f32.gmra.mxu0 %v1240
      %v1405 = vpop.f32.mrf.mxu0
      %v1406 = vadd.f32 %v1282, %v1405
      %v1407 = vpop.f32.mrf.mxu0
      %1408 = vmatprep.mubr.f32.mxu0 0.0
      %1409 = vmatmul.mubr.f32.gmra.mxu0 %v1241
      %v1410 = vpop.f32.mrf.mxu0
      %v1411 = vadd.f32 %v1282, %v1410
      %v1412 = vpop.f32.mrf.mxu0
      %1413 = vmatprep.mubr.f32.mxu0 0.0
      %1414 = vmatmul.mubr.f32.gmra.mxu0 %v1242
      %v1415 = vpop.f32.mrf.mxu0
      %v1416 = vadd.f32 %v1282, %v1415
      %v1417 = vpop.f32.mrf.mxu0
      %1418 = vmatprep.mubr.f32.mxu0 0.0
      %1419 = vmatmul.mubr.f32.gmra.mxu0 %v1243
      %v1420 = vpop.f32.mrf.mxu0
      %v1421 = vadd.f32 %v1282, %v1420
      %v1422 = vpop.f32.mrf.mxu0
      %1423 = vmatprep.mubr.f32.mxu0 0.0
      %1424 = vmatmul.mubr.f32.gmra.mxu0 %v1244
      %v1425 = vpop.f32.mrf.mxu0
      %v1426 = vadd.f32 %v1282, %v1425
      %v1427 = vpop.f32.mrf.mxu0
      %1428 = vmatprep.mubr.f32.mxu0 0.0
      %1429 = vmatmul.mubr.f32.gmra.mxu0 %v1245
      %v1430 = vpop.f32.mrf.mxu0
      %v1431 = vadd.f32 %v1282, %v1430
      %v1432 = vpop.f32.mrf.mxu0
      %1433 = vmatprep.mubr.f32.mxu0 0.0
      %1434 = vmatmul.mubr.f32.gmra.mxu0 %v1246
      %v1435 = vpop.f32.mrf.mxu0
      %v1436 = vadd.f32 %v1282, %v1435
      %v1437 = vpop.f32.mrf.mxu0
      %1438 = vmatprep.mubr.f32.mxu0 0.0
      %1439 = vmatmul.mubr.f32.gmra.mxu0 %v1247
      %v1440 = vpop.f32.mrf.mxu0
      %v1441 = vadd.f32 %v1282, %v1440
      %v1442 = vpop.f32.mrf.mxu0
      %1443 = vmatprep.mubr.f32.mxu0 0.0
      %1444 = vmatmul.mubr.f32.gmra.mxu0 %v1248
      %v1445 = vpop.f32.mrf.mxu0
      %v1446 = vadd.f32 %v1282, %v1445
      %v1447 = vpop.f32.mrf.mxu0
      %1448 = vmatprep.mubr.f32.mxu0 0.0
      %1449 = vmatmul.mubr.f32.gmra.mxu0 %v1249
      %v1450 = vpop.f32.mrf.mxu0
      %v1451 = vadd.f32 %v1282, %v1450
      %v1452 = vpop.f32.mrf.mxu0
      %1453 = vmatprep.mubr.f32.mxu0 0.0
      %1454 = vmatmul.mubr.f32.gmra.mxu0 %v1250
      %v1455 = vpop.f32.mrf.mxu0
      %v1456 = vadd.f32 %v1282, %v1455
      %v1457 = vpop.f32.mrf.mxu0
      %1458 = vmatprep.mubr.f32.mxu0 0.0
      %1459 = vmatmul.mubr.f32.gmra.mxu0 %v1251
      %v1460 = vpop.f32.mrf.mxu0
      %v1461 = vadd.f32 %v1282, %v1460
      %v1462 = vpop.f32.mrf.mxu0
      %1463 = vmatprep.mubr.f32.mxu0 0.0
      %1464 = vmatmul.mubr.f32.gmra.mxu0 %v1252
      %v1465 = vpop.f32.mrf.mxu0
      %v1466 = vadd.f32 %v1282, %v1465
      %v1467 = vpop.f32.mrf.mxu0
      %1468 = vmatprep.mubr.f32.mxu0 0.0
      %1469 = vmatmul.mubr.f32.gmra.mxu0 %v1253
      %v1470 = vpop.f32.mrf.mxu0
      %v1471 = vadd.f32 %v1282, %v1470
      %v1472 = vpop.f32.mrf.mxu0
      %1473 = vmatprep.mubr.f32.mxu0 0.0
      %1474 = vmatmul.mubr.f32.gmra.mxu0 %v1254
      %v1475 = vpop.f32.mrf.mxu0
      %v1476 = vadd.f32 %v1282, %v1475
      %v1477 = vpop.f32.mrf.mxu0
      %1478 = vmatprep.mubr.f32.mxu0 0.0
      %1479 = vmatmul.mubr.f32.gmra.mxu0 %v1255
      %v1480 = vpop.f32.mrf.mxu0
      %v1481 = vadd.f32 %v1282, %v1480
      %v1482 = vpop.f32.mrf.mxu0
      %1483 = vmatprep.mubr.f32.mxu0 0.0
      %1484 = vmatmul.mubr.f32.gmra.mxu0 %v1256
      %v1485 = vpop.f32.mrf.mxu0
      %v1486 = vadd.f32 %v1282, %v1485
      %v1487 = vpop.f32.mrf.mxu0
      %1488 = vmatprep.mubr.f32.mxu0 0.0
      %1489 = vmatmul.mubr.f32.gmra.mxu0 %v1257
      %v1490 = vpop.f32.mrf.mxu0
      %v1491 = vadd.f32 %v1282, %v1490
      %v1492 = vpop.f32.mrf.mxu0
      %1493 = vmatprep.mubr.f32.mxu0 0.0
      %1494 = vmatmul.mubr.f32.gmra.mxu0 %v1258
      %v1495 = vpop.f32.mrf.mxu0
      %v1496 = vadd.f32 %v1282, %v1495
      %v1497 = vpop.f32.mrf.mxu0
      %1498 = vmatprep.mubr.f32.mxu0 0.0
      %1499 = vmatmul.mubr.f32.gmra.mxu0 %v1259
      %v1500 = vpop.f32.mrf.mxu0
      %v1501 = vadd.f32 %v1282, %v1500
      %v1502 = vpop.f32.mrf.mxu0
      %1503 = vmatprep.mubr.f32.mxu0 0.0
      %1504 = vmatmul.mubr.f32.gmra.mxu0 %v1260
      %v1505 = vpop.f32.mrf.mxu0
      %v1506 = vadd.f32 %v1282, %v1505
      %v1507 = vpop.f32.mrf.mxu0
      %1508 = vdwg.mxu0
      %v1509 = vmax.f32 %v1351, 0.0
      %v1510 = vmax.f32 %v1356, 0.0
      %v1511 = vmax.f32 %v1361, 0.0
      %v1512 = vmax.f32 %v1366, 0.0
      %v1513 = vmax.f32 %v1371, 0.0
      %v1514 = vmax.f32 %v1376, 0.0
      %v1515 = vmax.f32 %v1381, 0.0
      %v1516 = vmax.f32 %v1386, 0.0
      %v1517 = vmax.f32 %v1391, 0.0
      %v1518 = vmax.f32 %v1396, 0.0
      %v1519 = vmax.f32 %v1401, 0.0
      %v1520 = vmax.f32 %v1406, 0.0
      %v1521 = vmax.f32 %v1411, 0.0
      %v1522 = vmax.f32 %v1416, 0.0
      %v1523 = vmax.f32 %v1421, 0.0
      %v1524 = vmax.f32 %v1426, 0.0
      %v1525 = vmax.f32 %v1431, 0.0
      %v1526 = vmax.f32 %v1436, 0.0
      %v1527 = vmax.f32 %v1441, 0.0
      %v1528 = vmax.f32 %v1446, 0.0
      %v1529 = vmax.f32 %v1451, 0.0
      %v1530 = vmax.f32 %v1456, 0.0
      %v1531 = vmax.f32 %v1461, 0.0
      %v1532 = vmax.f32 %v1466, 0.0
      %v1533 = vmax.f32 %v1471, 0.0
      %v1534 = vmax.f32 %v1476, 0.0
      %v1535 = vmax.f32 %v1481, 0.0
      %v1536 = vmax.f32 %v1486, 0.0
      %v1537 = vmax.f32 %v1491, 0.0
      %v1538 = vmax.f32 %v1496, 0.0
      %v1539 = vmax.f32 %v1501, 0.0
      %v1540 = vmax.f32 %v1506, 0.0
      %1541 = vst.msk [vmem:[%s334] sm:$0xff] %vm379, %v1509
      %1542 = vst.msk [vmem:[%s334 + $0x8] sm:$0xff] %vm379, %v1510
      %1543 = vst.msk [vmem:[%s334 + $0x10] sm:$0xff] %vm379, %v1511
      %1544 = vst.msk [vmem:[%s334 + $0x18] sm:$0xff] %vm379, %v1512
      %1545 = vst.msk [vmem:[%s334 + $0x20] sm:$0xff] %vm379, %v1513
      %1546 = vst.msk [vmem:[%s334 + $0x28] sm:$0xff] %vm379, %v1514
      %1547 = vst.msk [vmem:[%s334 + $0x30] sm:$0xff] %vm379, %v1515
      %1548 = vst.msk [vmem:[%s334 + $0x38] sm:$0xff] %vm379, %v1516
      %1549 = vst.msk [vmem:[%s334 + $0x40] sm:$0xff] %vm379, %v1517
      %1550 = vst.msk [vmem:[%s334 + $0x48] sm:$0xff] %vm379, %v1518
      %1551 = vst.msk [vmem:[%s334 + $0x50] sm:$0xff] %vm379, %v1519
      %1552 = vst.msk [vmem:[%s334 + $0x58] sm:$0xff] %vm379, %v1520
      %1553 = vst.msk [vmem:[%s334 + $0x60] sm:$0xff] %vm379, %v1521
      %1554 = vst.msk [vmem:[%s334 + $0x68] sm:$0xff] %vm379, %v1522
      %1555 = vst.msk [vmem:[%s334 + $0x70] sm:$0xff] %vm379, %v1523
      %1556 = vst.msk [vmem:[%s334 + $0x78] sm:$0xff] %vm379, %v1524
      %1557 = vst.msk [vmem:[%s334 + $0x80] sm:$0xff] %vm379, %v1525
      %1558 = vst.msk [vmem:[%s334 + $0x88] sm:$0xff] %vm379, %v1526
      %1559 = vst.msk [vmem:[%s334 + $0x90] sm:$0xff] %vm379, %v1527
      %1560 = vst.msk [vmem:[%s334 + $0x98] sm:$0xff] %vm379, %v1528
      %1561 = vst.msk [vmem:[%s334 + $0xa0] sm:$0xff] %vm379, %v1529
      %1562 = vst.msk [vmem:[%s334 + $0xa8] sm:$0xff] %vm379, %v1530
      %1563 = vst.msk [vmem:[%s334 + $0xb0] sm:$0xff] %vm379, %v1531
      %1564 = vst.msk [vmem:[%s334 + $0xb8] sm:$0xff] %vm379, %v1532
      %1565 = vst.msk [vmem:[%s334 + $0xc0] sm:$0xff] %vm379, %v1533
      %1566 = vst.msk [vmem:[%s334 + $0xc8] sm:$0xff] %vm379, %v1534
      %1567 = vst.msk [vmem:[%s334 + $0xd0] sm:$0xff] %vm379, %v1535
      %1568 = vst.msk [vmem:[%s334 + $0xd8] sm:$0xff] %vm379, %v1536
      %1569 = vst.msk [vmem:[%s334 + $0xe0] sm:$0xff] %vm379, %v1537
      %1570 = vst.msk [vmem:[%s334 + $0xe8] sm:$0xff] %vm379, %v1538
      %1571 = vst.msk [vmem:[%s334 + $0xf0] sm:$0xff] %vm379, %v1539
      %1572 = vst.msk [vmem:[%s334 + $0xf8] sm:$0xff] %vm379, %v1540
      %s1573 = smul.u32 32, %s20
      %p1574 = scmp.lt.s32.totalorder %s1573, 63
      %s1575 = scalar_select %p1574, %s1573, 63
      %s1576 = smul.addr %s1575, 8
      %s1577 = scalar_lea.vmem %s9, %s1576
      // Predicated region
      $region57: #{tpu_custom_call.1} parent=55 // pred_check
        %p1578 = pneg %p232
      $region58: #{tpu_custom_call.1} parent=55 // pred_check_branch
        %1580 = sbr.rel (%p1578) target = $region60
      $region59: #{tpu_custom_call.1} parent=55 // pred_region
        %s1581 = smul.u32 32, %s20
      $region60: #{tpu_custom_call.1} parent=55 // pred_fallthru
        _
    $region56: #{tpu_custom_call.1} parent=5 // pred_fallthru
      _
    %p1582 = scmp.le.s32.totalorder 2, %s15
    // Predicated region
    $region61: #{tpu_custom_call.1} parent=5 // pred_check
      %p1583 = pneg %p1582
    $region62: #{tpu_custom_call.1} parent=5 // pred_check_branch
      %1585 = sbr.rel (%p1583) target = $region64
    $region63: #{tpu_custom_call.1} parent=5 // pred_region
      %s1586 = ssub.s32 %s15, 2
      // Predicated region
      $region65: #{tpu_custom_call.1} parent=63 // pred_check
        %p1587 = pneg %p238
      $region66: #{tpu_custom_call.1} parent=63 // pred_check_branch
        %1589 = sbr.rel (%p1587) target = $region68
      $region67: #{tpu_custom_call.1} parent=63 // pred_region
        %s1590 = smul.u32 32, %s21
        %p1591 = scmp.lt.s32.totalorder %s1590, 63
        %s1592 = scalar_select %p1591, %s1590, 63
        %s1593 = smul.addr %s1592, 8
        %s1594 = scalar_lea.vmem %s9, %s1593
      $region68: #{tpu_custom_call.1} parent=63 // pred_fallthru
        _
    $region64: #{tpu_custom_call.1} parent=5 // pred_fallthru
      _
  $region6: #{tpu_custom_call.1} parent=0 // loop_footer
    %s19 = sadd.s32 1, %s15
  $region7: #{tpu_custom_call.1} parent=0 // loop_footer_branch
    %14 = sbr.rel target = $region3
  $region8: #{tpu_custom_call.1} parent=0 // loop_exit
    _

</llo_original>
